<compile_context>
chip_gen: v6e
topology: v6e:2x2x1
jax: 0.10.0
libtpu: 0.0.40
codegen_flags: <defaults>
</compile_context>

<pallas_src>
import jax
import jax.numpy as jnp
from jax.experimental import pallas as pl
from jax.experimental.pallas import tpu as pltpu

IN_FEATURES = 6
OUT_FEATURES = 2
NEURONS = (32, 64, 64, 32, 16)     # self.neurons
N_HIDDEN = len(NEURONS)
N_LAYERS = N_HIDDEN + 1
BN_EPS = 1e-5

HID_PAD = 64                        # uniform padded width (lanes) of every layer
VEC_ROWS = 8                        # one 8-row block per layer for (bias, gamma, beta)
BLOCK_ROWS = HID_PAD + VEC_ROWS     # 72 rows per layer in the packed buffer
TOTAL_ROWS = N_LAYERS * BLOCK_ROWS  # 432


def _layer_dims(layer):
    dims = (IN_FEATURES, *NEURONS, OUT_FEATURES)
    return dims[layer], dims[layer + 1]


def _mlp_kernel(x_ref, p_ref, o_ref):
    """Fused forward pass.

    x_ref : [B, 64] f32 (input padded to 64 lanes, zeros in lanes >= 6)
    p_ref : [432, 64] f32 packed parameters (single DMA, static row offsets)
    o_ref : [B, 64] f32 lane-dense output slab (cols >= 2 are zero)
    """
    B = x_ref.shape[0]
    # 1/B folded into the ones row so mean/E[h^2] come straight out of the MXU (hoisted).
    ones_b = jnp.full((1, B), 1.0 / B, dtype=jnp.float32)

    h = x_ref[...].astype(jnp.float32)               # [B, 64]

    for layer in range(N_HIDDEN):
        w_off = layer * BLOCK_ROWS
        v_off = w_off + HID_PAD
        w = p_ref[w_off:w_off + HID_PAD, :]          # [64, 64] (zero-padded rows/cols)
        b = p_ref[v_off:v_off + 1, :]                # [1, 64]
        gamma = p_ref[v_off + 1:v_off + 2, :]        # [1, 64] (0 in padded lanes)
        beta = p_ref[v_off + 2:v_off + 3, :]         # [1, 64] (0 in padded lanes)

        # Linear + ReLU
        h = jnp.dot(h, w, preferred_element_type=jnp.float32) + b
        h = jnp.maximum(h, 0.0)

        # BatchNorm1d (training-mode batch stats); reductions on the idle MXU.
        mean = jnp.dot(ones_b, h, preferred_element_type=jnp.float32)       # [1, 64]
        ex2 = jnp.dot(ones_b, h * h, preferred_element_type=jnp.float32)    # [1, 64]
        var = ex2 - mean * mean
        scale = gamma * jax.lax.rsqrt(var + BN_EPS)  # 0 in padded lanes (gamma == 0 there)
        shift = beta - mean * scale                  # 0 in padded lanes
        h = h * scale + shift                        # single FMA over [B, 64]

    # Final Linear (16 -> 2) computed with the full padded [64,64] block -> lane-dense store.
    w_off = N_HIDDEN * BLOCK_ROWS
    v_off = w_off + HID_PAD
    w = p_ref[w_off:w_off + HID_PAD, :]              # [64, 64], cols >= 2 are zero
    b = p_ref[v_off:v_off + 1, :]                    # [1, 64],  cols >= 2 are zero
    o_ref[...] = (jnp.dot(h, w, preferred_element_type=jnp.float32) + b).astype(o_ref.dtype)


def init_params(key):
    """Deterministic parameter init (shapes follow the PyTorch module)."""
    dims = [IN_FEATURES, *NEURONS, OUT_FEATURES]
    params = []
    for i in range(len(dims) - 1):
        fan_in, fan_out = dims[i], dims[i + 1]
        key, kw, kb, kg, kbeta = jax.random.split(key, 5)
        bound = 1.0 / jnp.sqrt(jnp.float32(fan_in))
        w = jax.random.uniform(kw, (fan_in, fan_out), jnp.float32, -bound, bound)
        b = jax.random.uniform(kb, (1, fan_out), jnp.float32, -bound, bound)
        params.append(w)
        params.append(b)
        if i < N_HIDDEN:  # hidden layers carry a BatchNorm1d
            gamma = 1.0 + 0.1 * jax.random.normal(kg, (1, fan_out), jnp.float32)
            beta = 0.1 * jax.random.normal(kbeta, (1, fan_out), jnp.float32)
            params.append(gamma)
            params.append(beta)
    return params


def pack_params(params):
    """Pack the 22 small arrays into one [432, 64] f32 buffer (one HBM->VMEM DMA)."""
    blocks = []
    idx = 0
    for layer in range(N_LAYERS):
        fan_in, fan_out = _layer_dims(layer)
        w = params[idx]
        b = params[idx + 1]
        wblk = jnp.zeros((HID_PAD, HID_PAD), jnp.float32)
        wblk = wblk.at[:fan_in, :fan_out].set(w.astype(jnp.float32))
        vblk = jnp.zeros((VEC_ROWS, HID_PAD), jnp.float32)
        vblk = vblk.at[0, :fan_out].set(b.reshape(-1).astype(jnp.float32))
        if layer < N_HIDDEN:
            gamma, beta = params[idx + 2], params[idx + 3]
            vblk = vblk.at[1, :fan_out].set(gamma.reshape(-1).astype(jnp.float32))
            vblk = vblk.at[2, :fan_out].set(beta.reshape(-1).astype(jnp.float32))
            idx += 4
        else:
            idx += 2
        blocks.append(wblk)
        blocks.append(vblk)
    packed = jnp.concatenate(blocks, axis=0)
    assert packed.shape == (TOTAL_ROWS, HID_PAD), packed.shape
    return packed


@jax.jit
def my_model_2yaw_forward(x, packed_params):
    B = x.shape[0]
    # Pad the input to the uniform 64-lane width (lanes >= 6 stay zero through the whole net).
    x_pad = jnp.zeros((B, HID_PAD), jnp.float32).at[:, :IN_FEATURES].set(
        x.astype(jnp.float32))

    matmul_flops = 2 * B * HID_PAD * HID_PAD * N_LAYERS          # padded layer matmuls
    stats_flops = 2 * 2 * B * HID_PAD * N_HIDDEN                 # mean / E[h^2] dots
    vpu_flops = 6 * B * HID_PAD * N_HIDDEN                       # relu, square, BN FMA ...
    cost = pl.CostEstimate(
        flops=matmul_flops + stats_flops + vpu_flops,
        transcendentals=N_HIDDEN * HID_PAD,                      # rsqrt per hidden lane
        bytes_accessed=4 * (TOTAL_ROWS * HID_PAD + 2 * B * HID_PAD),
    )

    out = pl.pallas_call(
        _mlp_kernel,
        out_shape=jax.ShapeDtypeStruct((B, HID_PAD), jnp.float32),
        # Tiny problem: no grid — both inputs are single full-extent VMEM-resident blocks.
        in_specs=[pl.BlockSpec(memory_space=pltpu.MemorySpace.VMEM),
                  pl.BlockSpec(memory_space=pltpu.MemorySpace.VMEM)],
        out_specs=pl.BlockSpec(memory_space=pltpu.MemorySpace.VMEM),
        cost_estimate=cost,
    )(x_pad, packed_params)
    # Lane-dense slab inside the kernel; the cheap [:, :2] slice is plain XLA outside.
    return out[:, :OUT_FEATURES]


def reference_forward(x, params):
    """Plain-JAX reference mirroring the PyTorch forward (training-mode BN)."""
    h = x.astype(jnp.float32)
    idx = 0
    for _ in range(N_HIDDEN):
        w, b, gamma, beta = params[idx], params[idx + 1], params[idx + 2], params[idx + 3]
        idx += 4
        h = jnp.maximum(h @ w + b, 0.0)
        mean = jnp.mean(h, axis=0, keepdims=True)
        var = jnp.mean((h - mean) ** 2, axis=0, keepdims=True)
        h = (h - mean) / jnp.sqrt(var + BN_EPS) * gamma + beta
    w, b = params[idx], params[idx + 1]
    return h @ w + b


if __name__ == "__main__":
    key = jax.random.PRNGKey(0)
    key, kx = jax.random.split(key)

    B = 8  # batch (sublane-friendly)
    x = jax.random.normal(kx, (B, IN_FEATURES), jnp.float32)
    params = init_params(key)
    packed = pack_params(params)

    out = my_model_2yaw_forward(x, packed)
    out = jax.block_until_ready(out)

    ref = reference_forward(x, params)
    assert out.shape == (B, OUT_FEATURES), out.shape
    assert jnp.allclose(out, ref, atol=1e-4, rtol=1e-4), (
        f"mismatch: max abs err {jnp.max(jnp.abs(out - ref))}")

    print("KERNEL_OK")
</pallas_src>

<mosaic_0001>
module attributes {stable_mosaic.version = 11 : i64} {
  func.func @_mlp_kernel(%arg0: memref<8x64xf32, #tpu.memory_space<vmem>>, %arg1: memref<432x64xf32, #tpu.memory_space<vmem>>, %arg2: memref<8x64xf32, #tpu.memory_space<vmem>>) attributes {dimension_semantics = [], scalar_prefetch = 0 : i64, scratch_operands = 0 : i64, tpu.core_type = #tpu.core_type<tc>} {
    %cst = arith.constant 1.250000e-01 : f32
    %0 = vector.broadcast %cst : f32 to vector<1x8xf32>
    %c0 = arith.constant 0 : index
    %c0_0 = arith.constant 0 : index
    %1 = vector.load %arg0[%c0, %c0_0] : memref<8x64xf32, #tpu.memory_space<vmem>>, vector<8x64xf32>
    %c0_1 = arith.constant 0 : index
    %c0_2 = arith.constant 0 : index
    %2 = vector.load %arg1[%c0_1, %c0_2] : memref<432x64xf32, #tpu.memory_space<vmem>>, vector<64x64xf32>
    %c64 = arith.constant 64 : index
    %c0_3 = arith.constant 0 : index
    %3 = vector.load %arg1[%c64, %c0_3] : memref<432x64xf32, #tpu.memory_space<vmem>>, vector<1x64xf32>
    %c65 = arith.constant 65 : index
    %c0_4 = arith.constant 0 : index
    %4 = vector.load %arg1[%c65, %c0_4] : memref<432x64xf32, #tpu.memory_space<vmem>>, vector<1x64xf32>
    %c66 = arith.constant 66 : index
    %c0_5 = arith.constant 0 : index
    %5 = vector.load %arg1[%c66, %c0_5] : memref<432x64xf32, #tpu.memory_space<vmem>>, vector<1x64xf32>
    %cst_6 = arith.constant dense<0.000000e+00> : vector<8x64xf32>
    %6 = tpu.matmul %1, %2, %cst_6 {dimension_numbers = #tpu.dot_dimension_numbers<[1], [0], [0], [1], [0, 0, 1, 1], [], []>} : vector<8x64xf32>, vector<64x64xf32>, vector<8x64xf32> -> vector<8x64xf32>
    %7 = vector.broadcast %3 : vector<1x64xf32> to vector<8x64xf32>
    %8 = arith.addf %6, %7 : vector<8x64xf32>
    %cst_7 = arith.constant 0.000000e+00 : f32
    %9 = vector.broadcast %cst_7 : f32 to vector<8x64xf32>
    %10 = arith.maximumf %8, %9 : vector<8x64xf32>
    %cst_8 = arith.constant dense<0.000000e+00> : vector<1x64xf32>
    %11 = tpu.matmul %0, %10, %cst_8 {dimension_numbers = #tpu.dot_dimension_numbers<[1], [0], [0], [1], [0, 0, 1, 1], [], []>} : vector<1x8xf32>, vector<8x64xf32>, vector<1x64xf32> -> vector<1x64xf32>
    %12 = arith.mulf %10, %10 : vector<8x64xf32>
    %cst_9 = arith.constant dense<0.000000e+00> : vector<1x64xf32>
    %13 = tpu.matmul %0, %12, %cst_9 {dimension_numbers = #tpu.dot_dimension_numbers<[1], [0], [0], [1], [0, 0, 1, 1], [], []>} : vector<1x8xf32>, vector<8x64xf32>, vector<1x64xf32> -> vector<1x64xf32>
    %14 = arith.mulf %11, %11 : vector<1x64xf32>
    %15 = arith.subf %13, %14 : vector<1x64xf32>
    %cst_10 = arith.constant 9.99999974E-6 : f32
    %16 = vector.broadcast %cst_10 : f32 to vector<1x64xf32>
    %17 = arith.addf %15, %16 : vector<1x64xf32>
    %18 = math.rsqrt %17 : vector<1x64xf32>
    %19 = arith.mulf %4, %18 : vector<1x64xf32>
    %20 = arith.mulf %11, %19 : vector<1x64xf32>
    %21 = arith.subf %5, %20 : vector<1x64xf32>
    %22 = vector.broadcast %19 : vector<1x64xf32> to vector<8x64xf32>
    %23 = arith.mulf %10, %22 : vector<8x64xf32>
    %24 = vector.broadcast %21 : vector<1x64xf32> to vector<8x64xf32>
    %25 = arith.addf %23, %24 : vector<8x64xf32>
    %c72 = arith.constant 72 : index
    %c0_11 = arith.constant 0 : index
    %26 = vector.load %arg1[%c72, %c0_11] : memref<432x64xf32, #tpu.memory_space<vmem>>, vector<64x64xf32>
    %c136 = arith.constant 136 : index
    %c0_12 = arith.constant 0 : index
    %27 = vector.load %arg1[%c136, %c0_12] : memref<432x64xf32, #tpu.memory_space<vmem>>, vector<1x64xf32>
    %c137 = arith.constant 137 : index
    %c0_13 = arith.constant 0 : index
    %28 = vector.load %arg1[%c137, %c0_13] : memref<432x64xf32, #tpu.memory_space<vmem>>, vector<1x64xf32>
    %c138 = arith.constant 138 : index
    %c0_14 = arith.constant 0 : index
    %29 = vector.load %arg1[%c138, %c0_14] : memref<432x64xf32, #tpu.memory_space<vmem>>, vector<1x64xf32>
    %cst_15 = arith.constant dense<0.000000e+00> : vector<8x64xf32>
    %30 = tpu.matmul %25, %26, %cst_15 {dimension_numbers = #tpu.dot_dimension_numbers<[1], [0], [0], [1], [0, 0, 1, 1], [], []>} : vector<8x64xf32>, vector<64x64xf32>, vector<8x64xf32> -> vector<8x64xf32>
    %31 = vector.broadcast %27 : vector<1x64xf32> to vector<8x64xf32>
    %32 = arith.addf %30, %31 : vector<8x64xf32>
    %cst_16 = arith.constant 0.000000e+00 : f32
    %33 = vector.broadcast %cst_16 : f32 to vector<8x64xf32>
    %34 = arith.maximumf %32, %33 : vector<8x64xf32>
    %cst_17 = arith.constant dense<0.000000e+00> : vector<1x64xf32>
    %35 = tpu.matmul %0, %34, %cst_17 {dimension_numbers = #tpu.dot_dimension_numbers<[1], [0], [0], [1], [0, 0, 1, 1], [], []>} : vector<1x8xf32>, vector<8x64xf32>, vector<1x64xf32> -> vector<1x64xf32>
    %36 = arith.mulf %34, %34 : vector<8x64xf32>
    %cst_18 = arith.constant dense<0.000000e+00> : vector<1x64xf32>
    %37 = tpu.matmul %0, %36, %cst_18 {dimension_numbers = #tpu.dot_dimension_numbers<[1], [0], [0], [1], [0, 0, 1, 1], [], []>} : vector<1x8xf32>, vector<8x64xf32>, vector<1x64xf32> -> vector<1x64xf32>
    %38 = arith.mulf %35, %35 : vector<1x64xf32>
    %39 = arith.subf %37, %38 : vector<1x64xf32>
    %cst_19 = arith.constant 9.99999974E-6 : f32
    %40 = vector.broadcast %cst_19 : f32 to vector<1x64xf32>
    %41 = arith.addf %39, %40 : vector<1x64xf32>
    %42 = math.rsqrt %41 : vector<1x64xf32>
    %43 = arith.mulf %28, %42 : vector<1x64xf32>
    %44 = arith.mulf %35, %43 : vector<1x64xf32>
    %45 = arith.subf %29, %44 : vector<1x64xf32>
    %46 = vector.broadcast %43 : vector<1x64xf32> to vector<8x64xf32>
    %47 = arith.mulf %34, %46 : vector<8x64xf32>
    %48 = vector.broadcast %45 : vector<1x64xf32> to vector<8x64xf32>
    %49 = arith.addf %47, %48 : vector<8x64xf32>
    %c144 = arith.constant 144 : index
    %c0_20 = arith.constant 0 : index
    %50 = vector.load %arg1[%c144, %c0_20] : memref<432x64xf32, #tpu.memory_space<vmem>>, vector<64x64xf32>
    %c208 = arith.constant 208 : index
    %c0_21 = arith.constant 0 : index
    %51 = vector.load %arg1[%c208, %c0_21] : memref<432x64xf32, #tpu.memory_space<vmem>>, vector<1x64xf32>
    %c209 = arith.constant 209 : index
    %c0_22 = arith.constant 0 : index
    %52 = vector.load %arg1[%c209, %c0_22] : memref<432x64xf32, #tpu.memory_space<vmem>>, vector<1x64xf32>
    %c210 = arith.constant 210 : index
    %c0_23 = arith.constant 0 : index
    %53 = vector.load %arg1[%c210, %c0_23] : memref<432x64xf32, #tpu.memory_space<vmem>>, vector<1x64xf32>
    %cst_24 = arith.constant dense<0.000000e+00> : vector<8x64xf32>
    %54 = tpu.matmul %49, %50, %cst_24 {dimension_numbers = #tpu.dot_dimension_numbers<[1], [0], [0], [1], [0, 0, 1, 1], [], []>} : vector<8x64xf32>, vector<64x64xf32>, vector<8x64xf32> -> vector<8x64xf32>
    %55 = vector.broadcast %51 : vector<1x64xf32> to vector<8x64xf32>
    %56 = arith.addf %54, %55 : vector<8x64xf32>
    %cst_25 = arith.constant 0.000000e+00 : f32
    %57 = vector.broadcast %cst_25 : f32 to vector<8x64xf32>
    %58 = arith.maximumf %56, %57 : vector<8x64xf32>
    %cst_26 = arith.constant dense<0.000000e+00> : vector<1x64xf32>
    %59 = tpu.matmul %0, %58, %cst_26 {dimension_numbers = #tpu.dot_dimension_numbers<[1], [0], [0], [1], [0, 0, 1, 1], [], []>} : vector<1x8xf32>, vector<8x64xf32>, vector<1x64xf32> -> vector<1x64xf32>
    %60 = arith.mulf %58, %58 : vector<8x64xf32>
    %cst_27 = arith.constant dense<0.000000e+00> : vector<1x64xf32>
    %61 = tpu.matmul %0, %60, %cst_27 {dimension_numbers = #tpu.dot_dimension_numbers<[1], [0], [0], [1], [0, 0, 1, 1], [], []>} : vector<1x8xf32>, vector<8x64xf32>, vector<1x64xf32> -> vector<1x64xf32>
    %62 = arith.mulf %59, %59 : vector<1x64xf32>
    %63 = arith.subf %61, %62 : vector<1x64xf32>
    %cst_28 = arith.constant 9.99999974E-6 : f32
    %64 = vector.broadcast %cst_28 : f32 to vector<1x64xf32>
    %65 = arith.addf %63, %64 : vector<1x64xf32>
    %66 = math.rsqrt %65 : vector<1x64xf32>
    %67 = arith.mulf %52, %66 : vector<1x64xf32>
    %68 = arith.mulf %59, %67 : vector<1x64xf32>
    %69 = arith.subf %53, %68 : vector<1x64xf32>
    %70 = vector.broadcast %67 : vector<1x64xf32> to vector<8x64xf32>
    %71 = arith.mulf %58, %70 : vector<8x64xf32>
    %72 = vector.broadcast %69 : vector<1x64xf32> to vector<8x64xf32>
    %73 = arith.addf %71, %72 : vector<8x64xf32>
    %c216 = arith.constant 216 : index
    %c0_29 = arith.constant 0 : index
    %74 = vector.load %arg1[%c216, %c0_29] : memref<432x64xf32, #tpu.memory_space<vmem>>, vector<64x64xf32>
    %c280 = arith.constant 280 : index
    %c0_30 = arith.constant 0 : index
    %75 = vector.load %arg1[%c280, %c0_30] : memref<432x64xf32, #tpu.memory_space<vmem>>, vector<1x64xf32>
    %c281 = arith.constant 281 : index
    %c0_31 = arith.constant 0 : index
    %76 = vector.load %arg1[%c281, %c0_31] : memref<432x64xf32, #tpu.memory_space<vmem>>, vector<1x64xf32>
    %c282 = arith.constant 282 : index
    %c0_32 = arith.constant 0 : index
    %77 = vector.load %arg1[%c282, %c0_32] : memref<432x64xf32, #tpu.memory_space<vmem>>, vector<1x64xf32>
    %cst_33 = arith.constant dense<0.000000e+00> : vector<8x64xf32>
    %78 = tpu.matmul %73, %74, %cst_33 {dimension_numbers = #tpu.dot_dimension_numbers<[1], [0], [0], [1], [0, 0, 1, 1], [], []>} : vector<8x64xf32>, vector<64x64xf32>, vector<8x64xf32> -> vector<8x64xf32>
    %79 = vector.broadcast %75 : vector<1x64xf32> to vector<8x64xf32>
    %80 = arith.addf %78, %79 : vector<8x64xf32>
    %cst_34 = arith.constant 0.000000e+00 : f32
    %81 = vector.broadcast %cst_34 : f32 to vector<8x64xf32>
    %82 = arith.maximumf %80, %81 : vector<8x64xf32>
    %cst_35 = arith.constant dense<0.000000e+00> : vector<1x64xf32>
    %83 = tpu.matmul %0, %82, %cst_35 {dimension_numbers = #tpu.dot_dimension_numbers<[1], [0], [0], [1], [0, 0, 1, 1], [], []>} : vector<1x8xf32>, vector<8x64xf32>, vector<1x64xf32> -> vector<1x64xf32>
    %84 = arith.mulf %82, %82 : vector<8x64xf32>
    %cst_36 = arith.constant dense<0.000000e+00> : vector<1x64xf32>
    %85 = tpu.matmul %0, %84, %cst_36 {dimension_numbers = #tpu.dot_dimension_numbers<[1], [0], [0], [1], [0, 0, 1, 1], [], []>} : vector<1x8xf32>, vector<8x64xf32>, vector<1x64xf32> -> vector<1x64xf32>
    %86 = arith.mulf %83, %83 : vector<1x64xf32>
    %87 = arith.subf %85, %86 : vector<1x64xf32>
    %cst_37 = arith.constant 9.99999974E-6 : f32
    %88 = vector.broadcast %cst_37 : f32 to vector<1x64xf32>
    %89 = arith.addf %87, %88 : vector<1x64xf32>
    %90 = math.rsqrt %89 : vector<1x64xf32>
    %91 = arith.mulf %76, %90 : vector<1x64xf32>
    %92 = arith.mulf %83, %91 : vector<1x64xf32>
    %93 = arith.subf %77, %92 : vector<1x64xf32>
    %94 = vector.broadcast %91 : vector<1x64xf32> to vector<8x64xf32>
    %95 = arith.mulf %82, %94 : vector<8x64xf32>
    %96 = vector.broadcast %93 : vector<1x64xf32> to vector<8x64xf32>
    %97 = arith.addf %95, %96 : vector<8x64xf32>
    %c288 = arith.constant 288 : index
    %c0_38 = arith.constant 0 : index
    %98 = vector.load %arg1[%c288, %c0_38] : memref<432x64xf32, #tpu.memory_space<vmem>>, vector<64x64xf32>
    %c352 = arith.constant 352 : index
    %c0_39 = arith.constant 0 : index
    %99 = vector.load %arg1[%c352, %c0_39] : memref<432x64xf32, #tpu.memory_space<vmem>>, vector<1x64xf32>
    %c353 = arith.constant 353 : index
    %c0_40 = arith.constant 0 : index
    %100 = vector.load %arg1[%c353, %c0_40] : memref<432x64xf32, #tpu.memory_space<vmem>>, vector<1x64xf32>
    %c354 = arith.constant 354 : index
    %c0_41 = arith.constant 0 : index
    %101 = vector.load %arg1[%c354, %c0_41] : memref<432x64xf32, #tpu.memory_space<vmem>>, vector<1x64xf32>
    %cst_42 = arith.constant dense<0.000000e+00> : vector<8x64xf32>
    %102 = tpu.matmul %97, %98, %cst_42 {dimension_numbers = #tpu.dot_dimension_numbers<[1], [0], [0], [1], [0, 0, 1, 1], [], []>} : vector<8x64xf32>, vector<64x64xf32>, vector<8x64xf32> -> vector<8x64xf32>
    %103 = vector.broadcast %99 : vector<1x64xf32> to vector<8x64xf32>
    %104 = arith.addf %102, %103 : vector<8x64xf32>
    %cst_43 = arith.constant 0.000000e+00 : f32
    %105 = vector.broadcast %cst_43 : f32 to vector<8x64xf32>
    %106 = arith.maximumf %104, %105 : vector<8x64xf32>
    %cst_44 = arith.constant dense<0.000000e+00> : vector<1x64xf32>
    %107 = tpu.matmul %0, %106, %cst_44 {dimension_numbers = #tpu.dot_dimension_numbers<[1], [0], [0], [1], [0, 0, 1, 1], [], []>} : vector<1x8xf32>, vector<8x64xf32>, vector<1x64xf32> -> vector<1x64xf32>
    %108 = arith.mulf %106, %106 : vector<8x64xf32>
    %cst_45 = arith.constant dense<0.000000e+00> : vector<1x64xf32>
    %109 = tpu.matmul %0, %108, %cst_45 {dimension_numbers = #tpu.dot_dimension_numbers<[1], [0], [0], [1], [0, 0, 1, 1], [], []>} : vector<1x8xf32>, vector<8x64xf32>, vector<1x64xf32> -> vector<1x64xf32>
    %110 = arith.mulf %107, %107 : vector<1x64xf32>
    %111 = arith.subf %109, %110 : vector<1x64xf32>
    %cst_46 = arith.constant 9.99999974E-6 : f32
    %112 = vector.broadcast %cst_46 : f32 to vector<1x64xf32>
    %113 = arith.addf %111, %112 : vector<1x64xf32>
    %114 = math.rsqrt %113 : vector<1x64xf32>
    %115 = arith.mulf %100, %114 : vector<1x64xf32>
    %116 = arith.mulf %107, %115 : vector<1x64xf32>
    %117 = arith.subf %101, %116 : vector<1x64xf32>
    %118 = vector.broadcast %115 : vector<1x64xf32> to vector<8x64xf32>
    %119 = arith.mulf %106, %118 : vector<8x64xf32>
    %120 = vector.broadcast %117 : vector<1x64xf32> to vector<8x64xf32>
    %121 = arith.addf %119, %120 : vector<8x64xf32>
    %c360 = arith.constant 360 : index
    %c0_47 = arith.constant 0 : index
    %122 = vector.load %arg1[%c360, %c0_47] : memref<432x64xf32, #tpu.memory_space<vmem>>, vector<64x64xf32>
    %c424 = arith.constant 424 : index
    %c0_48 = arith.constant 0 : index
    %123 = vector.load %arg1[%c424, %c0_48] : memref<432x64xf32, #tpu.memory_space<vmem>>, vector<1x64xf32>
    %cst_49 = arith.constant dense<0.000000e+00> : vector<8x64xf32>
    %124 = tpu.matmul %121, %122, %cst_49 {dimension_numbers = #tpu.dot_dimension_numbers<[1], [0], [0], [1], [0, 0, 1, 1], [], []>} : vector<8x64xf32>, vector<64x64xf32>, vector<8x64xf32> -> vector<8x64xf32>
    %125 = vector.broadcast %123 : vector<1x64xf32> to vector<8x64xf32>
    %126 = arith.addf %124, %125 : vector<8x64xf32>
    %c0_50 = arith.constant 0 : index
    %c0_51 = arith.constant 0 : index
    %127 = vector.load %arg2[%c0_50, %c0_51] : memref<8x64xf32, #tpu.memory_space<vmem>>, vector<8x64xf32>
    tpu.vector_store %arg2[%c0_50, %c0_51], %126 {strides = array<i32>} : memref<8x64xf32, #tpu.memory_space<vmem>>, vector<8x64xf32>,
    return
  }
}

</mosaic_0001>

<llo_original>
// kernel: my_model_2yaw_forward.1
$region0: #{my_model_2yaw_forward.1}
  #allocation0 [shape = 'u32[]', space=smem, size = 0x4, offset = 0x4, fixed_abs, tag = 'smem constant byte address 0x4 - core index']
  #allocation1 [shape = 'u32[144,128]{1,0:T(1,128)}', space=vmem, size = 0x12000, scoped, tag = 'internal scratch']
  %s0 = inlined_call_operand.vmem [shape: f32[8,64], index: 0, kind: input, shape index: {}]
  %s1 = inlined_call_operand.vmem [shape: f32[432,64], index: 1, kind: input, shape index: {}]
  %s2 = inlined_call_operand.vmem [shape: f32[8,64], index: 2, kind: output, shape index: {}]
  %s3 = sld [smem:[#allocation0]]
  $region18: #{my_model_2yaw_forward.1} parent=0
    _
  %s5 = ssub.s32 1, %s3
  %s6 = scalar_select 0, %s5, %s3
  // Predicated region
  $region2: #{my_model_2yaw_forward.1} parent=0 // pred_check
    _
  $region3: #{my_model_2yaw_forward.1} parent=0 // pred_check_branch
    %8 = sbr.rel (0) target = $region5
  $region4: #{my_model_2yaw_forward.1} parent=0 // pred_region
    _
  $region5: #{my_model_2yaw_forward.1} parent=0 // pred_fallthru
    _
  // Predicated region
  $region6: #{my_model_2yaw_forward.1} parent=0 // pred_check
    _
  $region7: #{my_model_2yaw_forward.1} parent=0 // pred_check_branch
    %10 = sbr.rel (0) target = $region9
  $region8: #{my_model_2yaw_forward.1} parent=0 // pred_region
    _
  $region9: #{my_model_2yaw_forward.1} parent=0 // pred_fallthru
    _
  %v11 = vld [vmem:[%s0] sm:$0xff]
  %v12 = vld [vmem:[%s1] sm:$0xff]
  %v13 = vld [vmem:[%s1 + $0x8] sm:$0xff]
  %v14 = vld [vmem:[%s1 + $0x10] sm:$0xff]
  %v15 = vld [vmem:[%s1 + $0x18] sm:$0xff]
  %v16 = vld [vmem:[%s1 + $0x20] sm:$0xff]
  %v17 = vld [vmem:[%s1 + $0x28] sm:$0xff]
  %v18 = vld [vmem:[%s1 + $0x30] sm:$0xff]
  %v19 = vld [vmem:[%s1 + $0x38] sm:$0xff]
  %v20 = vld [vmem:[%s1 + $0x40] sm:$0x1]
  %v21 = vld [vmem:[%s1 + $0x41] sm:$0x1]
  %v22 = vld [vmem:[%s1 + $0x42] sm:$0x1]
  %v23 = vlaneseq
  %v24 = vshrl.u32 %v23, 7
  %v25 = vsub.s32 0, %v24
  %v26 = vrot.slane %v20, %v25
  %vm27 = vcmask 523264
  %v29 = vsel %vm27, %v11, 0
  %31 = vmatprep.subr.mxu0 0.0
  %32 = vmatpush1.msra.mxu0 0.0
  %33 = vmatprep.subr.mxu0 0.0
  %34 = vmatpush1.msra.mxu0 0.0
  %35 = vmatprep.subr.mxu0 0.0
  %36 = vmatpush1.msra.mxu0 0.0
  %37 = vmatprep.subr.mxu0 0.0
  %38 = vmatpush1.msra.mxu0 0.0
  %39 = vmatprep.subr.mxu0 0.0
  %40 = vmatpush1.msra.mxu0 0.0
  %41 = vmatprep.subr.mxu0 0.0
  %42 = vmatpush1.msra.mxu0 0.0
  %43 = vmatprep.subr.mxu0 0.0
  %44 = vmatpush1.msra.mxu0 0.0
  %45 = vmatprep.subr.mxu0 0.0
  %46 = vmatpush1.msra.mxu0 0.0
  %47 = vmatprep.subr.mxu0 0.0
  %48 = vmatpush1.msra.mxu0 %v19
  %49 = vmatprep.subr.mxu0 0.0
  %50 = vmatpush1.msra.mxu0 %v18
  %51 = vmatprep.subr.mxu0 0.0
  %52 = vmatpush1.msra.mxu0 %v17
  %53 = vmatprep.subr.mxu0 0.0
  %54 = vmatpush1.msra.mxu0 %v16
  %55 = vmatprep.subr.mxu0 0.0
  %56 = vmatpush1.msra.mxu0 %v15
  %57 = vmatprep.subr.mxu0 0.0
  %58 = vmatpush1.msra.mxu0 %v14
  %59 = vmatprep.subr.mxu0 0.0
  %60 = vmatpush1.msra.mxu0 %v13
  %61 = vmatprep.subr.mxu0 0.0
  %62 = vmatpush1.msra.mxu0 %v12
  %63 = vmatprep.subr.mxu0 0.0
  %64 = vmatpush2.msra.mxu0 0.0
  %65 = vmatprep.subr.mxu0 0.0
  %66 = vmatpush2.msra.mxu0 0.0
  %67 = vmatprep.subr.mxu0 0.0
  %68 = vmatpush2.msra.mxu0 0.0
  %69 = vmatprep.subr.mxu0 0.0
  %70 = vmatpush2.msra.mxu0 0.0
  %71 = vmatprep.subr.mxu0 0.0
  %72 = vmatpush2.msra.mxu0 0.0
  %73 = vmatprep.subr.mxu0 0.0
  %74 = vmatpush2.msra.mxu0 0.0
  %75 = vmatprep.subr.mxu0 0.0
  %76 = vmatpush2.msra.mxu0 0.0
  %77 = vmatprep.subr.mxu0 0.0
  %78 = vmatpush2.msra.mxu0 0.0
  %79 = vmatprep.subr.mxu0 0.0
  %80 = vmatpush2.msra.mxu0 0.0
  %81 = vmatprep.subr.mxu0 0.0
  %82 = vmatpush2.msra.mxu0 0.0
  %83 = vmatprep.subr.mxu0 0.0
  %84 = vmatpush2.msra.mxu0 0.0
  %85 = vmatprep.subr.mxu0 0.0
  %86 = vmatpush2.msra.mxu0 0.0
  %87 = vmatprep.subr.mxu0 0.0
  %88 = vmatpush2.msra.mxu0 0.0
  %89 = vmatprep.subr.mxu0 0.0
  %90 = vmatpush2.msra.mxu0 0.0
  %91 = vmatprep.subr.mxu0 0.0
  %92 = vmatpush2.msra.mxu0 0.0
  %93 = vmatprep.subr.mxu0 0.0
  %94 = vmatpush2.msra.mxu0 0.0
  %95 = vmatprep.mubr.f32.mxu0 0.0
  %96 = vmatmul.mubr.f32.gmra.mxu0 %v29
  %v97 = vpop.f32.mrf.mxu0
  %v98 = vadd.f32 %v26, %v97
  %v99 = vpop.f32.mrf.mxu0
  %100 = vdwg.mxu0
  %v101 = vmax.f32 %v98, 0.0
  %vm102 = vcmask 64512
  %v104 = vsel %vm102, 0.125, 0
  %106 = vmatprep.subr.mxu0 0.0
  %107 = vmatpush1.msra.mxu0 0.0
  %108 = vmatprep.subr.mxu0 0.0
  %109 = vmatpush1.msra.mxu0 0.0
  %110 = vmatprep.subr.mxu0 0.0
  %111 = vmatpush1.msra.mxu0 0.0
  %112 = vmatprep.subr.mxu0 0.0
  %113 = vmatpush1.msra.mxu0 0.0
  %114 = vmatprep.subr.mxu0 0.0
  %115 = vmatpush1.msra.mxu0 0.0
  %116 = vmatprep.subr.mxu0 0.0
  %117 = vmatpush1.msra.mxu0 0.0
  %118 = vmatprep.subr.mxu0 0.0
  %119 = vmatpush1.msra.mxu0 0.0
  %120 = vmatprep.subr.mxu0 0.0
  %121 = vmatpush1.msra.mxu0 0.0
  %122 = vmatprep.subr.mxu0 0.0
  %123 = vmatpush1.msra.mxu0 0.0
  %124 = vmatprep.subr.mxu0 0.0
  %125 = vmatpush1.msra.mxu0 0.0
  %126 = vmatprep.subr.mxu0 0.0
  %127 = vmatpush1.msra.mxu0 0.0
  %128 = vmatprep.subr.mxu0 0.0
  %129 = vmatpush1.msra.mxu0 0.0
  %130 = vmatprep.subr.mxu0 0.0
  %131 = vmatpush1.msra.mxu0 0.0
  %132 = vmatprep.subr.mxu0 0.0
  %133 = vmatpush1.msra.mxu0 0.0
  %134 = vmatprep.subr.mxu0 0.0
  %135 = vmatpush1.msra.mxu0 0.0
  %136 = vmatprep.subr.mxu0 0.0
  %137 = vmatpush1.msra.mxu0 %v101
  %138 = vmatprep.subr.mxu0 0.0
  %139 = vmatpush2.msra.mxu0 0.0
  %140 = vmatprep.subr.mxu0 0.0
  %141 = vmatpush2.msra.mxu0 0.0
  %142 = vmatprep.subr.mxu0 0.0
  %143 = vmatpush2.msra.mxu0 0.0
  %144 = vmatprep.subr.mxu0 0.0
  %145 = vmatpush2.msra.mxu0 0.0
  %146 = vmatprep.subr.mxu0 0.0
  %147 = vmatpush2.msra.mxu0 0.0
  %148 = vmatprep.subr.mxu0 0.0
  %149 = vmatpush2.msra.mxu0 0.0
  %150 = vmatprep.subr.mxu0 0.0
  %151 = vmatpush2.msra.mxu0 0.0
  %152 = vmatprep.subr.mxu0 0.0
  %153 = vmatpush2.msra.mxu0 0.0
  %154 = vmatprep.subr.mxu0 0.0
  %155 = vmatpush2.msra.mxu0 0.0
  %156 = vmatprep.subr.mxu0 0.0
  %157 = vmatpush2.msra.mxu0 0.0
  %158 = vmatprep.subr.mxu0 0.0
  %159 = vmatpush2.msra.mxu0 0.0
  %160 = vmatprep.subr.mxu0 0.0
  %161 = vmatpush2.msra.mxu0 0.0
  %162 = vmatprep.subr.mxu0 0.0
  %163 = vmatpush2.msra.mxu0 0.0
  %164 = vmatprep.subr.mxu0 0.0
  %165 = vmatpush2.msra.mxu0 0.0
  %166 = vmatprep.subr.mxu0 0.0
  %167 = vmatpush2.msra.mxu0 0.0
  %168 = vmatprep.subr.mxu0 0.0
  %169 = vmatpush2.msra.mxu0 0.0
  %170 = vmatprep.mubr.f32.mxu0 0.0
  %171 = vmatmul.mubr.f32.gmra.mxu0 %v104
  %v172 = vpop.f32.mrf.mxu0
  %v173 = vadd.f32 0.0, %v172
  %v174 = vpop.f32.mrf.mxu0
  %175 = vdwg.mxu0
  %v176 = vmul.f32 %v101, %v101
  %177 = vmatprep.subr.mxu0 0.0
  %178 = vmatpush1.msra.mxu0 0.0
  %179 = vmatprep.subr.mxu0 0.0
  %180 = vmatpush1.msra.mxu0 0.0
  %181 = vmatprep.subr.mxu0 0.0
  %182 = vmatpush1.msra.mxu0 0.0
  %183 = vmatprep.subr.mxu0 0.0
  %184 = vmatpush1.msra.mxu0 0.0
  %185 = vmatprep.subr.mxu0 0.0
  %186 = vmatpush1.msra.mxu0 0.0
  %187 = vmatprep.subr.mxu0 0.0
  %188 = vmatpush1.msra.mxu0 0.0
  %189 = vmatprep.subr.mxu0 0.0
  %190 = vmatpush1.msra.mxu0 0.0
  %191 = vmatprep.subr.mxu0 0.0
  %192 = vmatpush1.msra.mxu0 0.0
  %193 = vmatprep.subr.mxu0 0.0
  %194 = vmatpush1.msra.mxu0 0.0
  %195 = vmatprep.subr.mxu0 0.0
  %196 = vmatpush1.msra.mxu0 0.0
  %197 = vmatprep.subr.mxu0 0.0
  %198 = vmatpush1.msra.mxu0 0.0
  %199 = vmatprep.subr.mxu0 0.0
  %200 = vmatpush1.msra.mxu0 0.0
  %201 = vmatprep.subr.mxu0 0.0
  %202 = vmatpush1.msra.mxu0 0.0
  %203 = vmatprep.subr.mxu0 0.0
  %204 = vmatpush1.msra.mxu0 0.0
  %205 = vmatprep.subr.mxu0 0.0
  %206 = vmatpush1.msra.mxu0 0.0
  %207 = vmatprep.subr.mxu0 0.0
  %208 = vmatpush1.msra.mxu0 %v176
  %209 = vmatprep.subr.mxu0 0.0
  %210 = vmatpush2.msra.mxu0 0.0
  %211 = vmatprep.subr.mxu0 0.0
  %212 = vmatpush2.msra.mxu0 0.0
  %213 = vmatprep.subr.mxu0 0.0
  %214 = vmatpush2.msra.mxu0 0.0
  %215 = vmatprep.subr.mxu0 0.0
  %216 = vmatpush2.msra.mxu0 0.0
  %217 = vmatprep.subr.mxu0 0.0
  %218 = vmatpush2.msra.mxu0 0.0
  %219 = vmatprep.subr.mxu0 0.0
  %220 = vmatpush2.msra.mxu0 0.0
  %221 = vmatprep.subr.mxu0 0.0
  %222 = vmatpush2.msra.mxu0 0.0
  %223 = vmatprep.subr.mxu0 0.0
  %224 = vmatpush2.msra.mxu0 0.0
  %225 = vmatprep.subr.mxu0 0.0
  %226 = vmatpush2.msra.mxu0 0.0
  %227 = vmatprep.subr.mxu0 0.0
  %228 = vmatpush2.msra.mxu0 0.0
  %229 = vmatprep.subr.mxu0 0.0
  %230 = vmatpush2.msra.mxu0 0.0
  %231 = vmatprep.subr.mxu0 0.0
  %232 = vmatpush2.msra.mxu0 0.0
  %233 = vmatprep.subr.mxu0 0.0
  %234 = vmatpush2.msra.mxu0 0.0
  %235 = vmatprep.subr.mxu0 0.0
  %236 = vmatpush2.msra.mxu0 0.0
  %237 = vmatprep.subr.mxu0 0.0
  %238 = vmatpush2.msra.mxu0 0.0
  %239 = vmatprep.subr.mxu0 0.0
  %240 = vmatpush2.msra.mxu0 0.0
  %241 = vmatprep.mubr.f32.mxu0 0.0
  %242 = vmatmul.mubr.f32.gmra.mxu0 %v104
  %v243 = vpop.f32.mrf.mxu0
  %v244 = vadd.f32 0.0, %v243
  %v245 = vpop.f32.mrf.mxu0
  %246 = vdwg.mxu0
  %v247 = vmul.f32 %v173, %v173
  %v248 = vsub.f32 %v244, %v247
  %v249 = vadd.f32 %v248, 1e-05
  %v250 = vrsqrt.pop %v249
  %v251 = vmul.f32 %v21, %v250
  %v252 = vmul.f32 %v173, %v251
  %v253 = vsub.f32 %v22, %v252
  %v254 = vlaneseq
  %v255 = vshrl.u32 %v254, 7
  %v256 = vsub.s32 0, %v255
  %v257 = vrot.slane %v251, %v256
  %v258 = vmul.f32 %v101, %v257
  %v259 = vlaneseq
  %v260 = vshrl.u32 %v259, 7
  %v261 = vsub.s32 0, %v260
  %v262 = vrot.slane %v253, %v261
  %v263 = vadd.f32 %v258, %v262
  %v264 = vld [vmem:[%s1 + $0x48] sm:$0xff]
  %v265 = vld [vmem:[%s1 + $0x50] sm:$0xff]
  %v266 = vld [vmem:[%s1 + $0x58] sm:$0xff]
  %v267 = vld [vmem:[%s1 + $0x60] sm:$0xff]
  %v268 = vld [vmem:[%s1 + $0x68] sm:$0xff]
  %v269 = vld [vmem:[%s1 + $0x70] sm:$0xff]
  %v270 = vld [vmem:[%s1 + $0x78] sm:$0xff]
  %v271 = vld [vmem:[%s1 + $0x80] sm:$0xff]
  %v272 = vld [vmem:[%s1 + $0x88] sm:$0x1]
  %v273 = vld [vmem:[%s1 + $0x89] sm:$0x1]
  %v274 = vld [vmem:[%s1 + $0x8a] sm:$0x1]
  %v275 = vlaneseq
  %v276 = vshrl.u32 %v275, 7
  %v277 = vsub.s32 0, %v276
  %v278 = vrot.slane %v272, %v277
  %v280 = vsel %vm27, %v263, 0
  %282 = vmatprep.subr.mxu0 0.0
  %283 = vmatpush1.msra.mxu0 0.0
  %284 = vmatprep.subr.mxu0 0.0
  %285 = vmatpush1.msra.mxu0 0.0
  %286 = vmatprep.subr.mxu0 0.0
  %287 = vmatpush1.msra.mxu0 0.0
  %288 = vmatprep.subr.mxu0 0.0
  %289 = vmatpush1.msra.mxu0 0.0
  %290 = vmatprep.subr.mxu0 0.0
  %291 = vmatpush1.msra.mxu0 0.0
  %292 = vmatprep.subr.mxu0 0.0
  %293 = vmatpush1.msra.mxu0 0.0
  %294 = vmatprep.subr.mxu0 0.0
  %295 = vmatpush1.msra.mxu0 0.0
  %296 = vmatprep.subr.mxu0 0.0
  %297 = vmatpush1.msra.mxu0 0.0
  %298 = vmatprep.subr.mxu0 0.0
  %299 = vmatpush1.msra.mxu0 %v271
  %300 = vmatprep.subr.mxu0 0.0
  %301 = vmatpush1.msra.mxu0 %v270
  %302 = vmatprep.subr.mxu0 0.0
  %303 = vmatpush1.msra.mxu0 %v269
  %304 = vmatprep.subr.mxu0 0.0
  %305 = vmatpush1.msra.mxu0 %v268
  %306 = vmatprep.subr.mxu0 0.0
  %307 = vmatpush1.msra.mxu0 %v267
  %308 = vmatprep.subr.mxu0 0.0
  %309 = vmatpush1.msra.mxu0 %v266
  %310 = vmatprep.subr.mxu0 0.0
  %311 = vmatpush1.msra.mxu0 %v265
  %312 = vmatprep.subr.mxu0 0.0
  %313 = vmatpush1.msra.mxu0 %v264
  %314 = vmatprep.subr.mxu0 0.0
  %315 = vmatpush2.msra.mxu0 0.0
  %316 = vmatprep.subr.mxu0 0.0
  %317 = vmatpush2.msra.mxu0 0.0
  %318 = vmatprep.subr.mxu0 0.0
  %319 = vmatpush2.msra.mxu0 0.0
  %320 = vmatprep.subr.mxu0 0.0
  %321 = vmatpush2.msra.mxu0 0.0
  %322 = vmatprep.subr.mxu0 0.0
  %323 = vmatpush2.msra.mxu0 0.0
  %324 = vmatprep.subr.mxu0 0.0
  %325 = vmatpush2.msra.mxu0 0.0
  %326 = vmatprep.subr.mxu0 0.0
  %327 = vmatpush2.msra.mxu0 0.0
  %328 = vmatprep.subr.mxu0 0.0
  %329 = vmatpush2.msra.mxu0 0.0
  %330 = vmatprep.subr.mxu0 0.0
  %331 = vmatpush2.msra.mxu0 0.0
  %332 = vmatprep.subr.mxu0 0.0
  %333 = vmatpush2.msra.mxu0 0.0
  %334 = vmatprep.subr.mxu0 0.0
  %335 = vmatpush2.msra.mxu0 0.0
  %336 = vmatprep.subr.mxu0 0.0
  %337 = vmatpush2.msra.mxu0 0.0
  %338 = vmatprep.subr.mxu0 0.0
  %339 = vmatpush2.msra.mxu0 0.0
  %340 = vmatprep.subr.mxu0 0.0
  %341 = vmatpush2.msra.mxu0 0.0
  %342 = vmatprep.subr.mxu0 0.0
  %343 = vmatpush2.msra.mxu0 0.0
  %344 = vmatprep.subr.mxu0 0.0
  %345 = vmatpush2.msra.mxu0 0.0
  %346 = vmatprep.mubr.f32.mxu0 0.0
  %347 = vmatmul.mubr.f32.gmra.mxu0 %v280
  %v348 = vpop.f32.mrf.mxu0
  %v349 = vadd.f32 %v278, %v348
  %v350 = vpop.f32.mrf.mxu0
  %351 = vdwg.mxu0
  %v352 = vmax.f32 %v349, 0.0
  %353 = vmatprep.subr.mxu0 0.0
  %354 = vmatpush1.msra.mxu0 0.0
  %355 = vmatprep.subr.mxu0 0.0
  %356 = vmatpush1.msra.mxu0 0.0
  %357 = vmatprep.subr.mxu0 0.0
  %358 = vmatpush1.msra.mxu0 0.0
  %359 = vmatprep.subr.mxu0 0.0
  %360 = vmatpush1.msra.mxu0 0.0
  %361 = vmatprep.subr.mxu0 0.0
  %362 = vmatpush1.msra.mxu0 0.0
  %363 = vmatprep.subr.mxu0 0.0
  %364 = vmatpush1.msra.mxu0 0.0
  %365 = vmatprep.subr.mxu0 0.0
  %366 = vmatpush1.msra.mxu0 0.0
  %367 = vmatprep.subr.mxu0 0.0
  %368 = vmatpush1.msra.mxu0 0.0
  %369 = vmatprep.subr.mxu0 0.0
  %370 = vmatpush1.msra.mxu0 0.0
  %371 = vmatprep.subr.mxu0 0.0
  %372 = vmatpush1.msra.mxu0 0.0
  %373 = vmatprep.subr.mxu0 0.0
  %374 = vmatpush1.msra.mxu0 0.0
  %375 = vmatprep.subr.mxu0 0.0
  %376 = vmatpush1.msra.mxu0 0.0
  %377 = vmatprep.subr.mxu0 0.0
  %378 = vmatpush1.msra.mxu0 0.0
  %379 = vmatprep.subr.mxu0 0.0
  %380 = vmatpush1.msra.mxu0 0.0
  %381 = vmatprep.subr.mxu0 0.0
  %382 = vmatpush1.msra.mxu0 0.0
  %383 = vmatprep.subr.mxu0 0.0
  %384 = vmatpush1.msra.mxu0 %v352
  %385 = vmatprep.subr.mxu0 0.0
  %386 = vmatpush2.msra.mxu0 0.0
  %387 = vmatprep.subr.mxu0 0.0
  %388 = vmatpush2.msra.mxu0 0.0
  %389 = vmatprep.subr.mxu0 0.0
  %390 = vmatpush2.msra.mxu0 0.0
  %391 = vmatprep.subr.mxu0 0.0
  %392 = vmatpush2.msra.mxu0 0.0
  %393 = vmatprep.subr.mxu0 0.0
  %394 = vmatpush2.msra.mxu0 0.0
  %395 = vmatprep.subr.mxu0 0.0
  %396 = vmatpush2.msra.mxu0 0.0
  %397 = vmatprep.subr.mxu0 0.0
  %398 = vmatpush2.msra.mxu0 0.0
  %399 = vmatprep.subr.mxu0 0.0
  %400 = vmatpush2.msra.mxu0 0.0
  %401 = vmatprep.subr.mxu0 0.0
  %402 = vmatpush2.msra.mxu0 0.0
  %403 = vmatprep.subr.mxu0 0.0
  %404 = vmatpush2.msra.mxu0 0.0
  %405 = vmatprep.subr.mxu0 0.0
  %406 = vmatpush2.msra.mxu0 0.0
  %407 = vmatprep.subr.mxu0 0.0
  %408 = vmatpush2.msra.mxu0 0.0
  %409 = vmatprep.subr.mxu0 0.0
  %410 = vmatpush2.msra.mxu0 0.0
  %411 = vmatprep.subr.mxu0 0.0
  %412 = vmatpush2.msra.mxu0 0.0
  %413 = vmatprep.subr.mxu0 0.0
  %414 = vmatpush2.msra.mxu0 0.0
  %415 = vmatprep.subr.mxu0 0.0
  %416 = vmatpush2.msra.mxu0 0.0
  %417 = vmatprep.mubr.f32.mxu0 0.0
  %418 = vmatmul.mubr.f32.gmra.mxu0 %v104
  %v419 = vpop.f32.mrf.mxu0
  %v420 = vadd.f32 0.0, %v419
  %v421 = vpop.f32.mrf.mxu0
  %422 = vdwg.mxu0
  %v423 = vmul.f32 %v352, %v352
  %424 = vmatprep.subr.mxu0 0.0
  %425 = vmatpush1.msra.mxu0 0.0
  %426 = vmatprep.subr.mxu0 0.0
  %427 = vmatpush1.msra.mxu0 0.0
  %428 = vmatprep.subr.mxu0 0.0
  %429 = vmatpush1.msra.mxu0 0.0
  %430 = vmatprep.subr.mxu0 0.0
  %431 = vmatpush1.msra.mxu0 0.0
  %432 = vmatprep.subr.mxu0 0.0
  %433 = vmatpush1.msra.mxu0 0.0
  %434 = vmatprep.subr.mxu0 0.0
  %435 = vmatpush1.msra.mxu0 0.0
  %436 = vmatprep.subr.mxu0 0.0
  %437 = vmatpush1.msra.mxu0 0.0
  %438 = vmatprep.subr.mxu0 0.0
  %439 = vmatpush1.msra.mxu0 0.0
  %440 = vmatprep.subr.mxu0 0.0
  %441 = vmatpush1.msra.mxu0 0.0
  %442 = vmatprep.subr.mxu0 0.0
  %443 = vmatpush1.msra.mxu0 0.0
  %444 = vmatprep.subr.mxu0 0.0
  %445 = vmatpush1.msra.mxu0 0.0
  %446 = vmatprep.subr.mxu0 0.0
  %447 = vmatpush1.msra.mxu0 0.0
  %448 = vmatprep.subr.mxu0 0.0
  %449 = vmatpush1.msra.mxu0 0.0
  %450 = vmatprep.subr.mxu0 0.0
  %451 = vmatpush1.msra.mxu0 0.0
  %452 = vmatprep.subr.mxu0 0.0
  %453 = vmatpush1.msra.mxu0 0.0
  %454 = vmatprep.subr.mxu0 0.0
  %455 = vmatpush1.msra.mxu0 %v423
  %456 = vmatprep.subr.mxu0 0.0
  %457 = vmatpush2.msra.mxu0 0.0
  %458 = vmatprep.subr.mxu0 0.0
  %459 = vmatpush2.msra.mxu0 0.0
  %460 = vmatprep.subr.mxu0 0.0
  %461 = vmatpush2.msra.mxu0 0.0
  %462 = vmatprep.subr.mxu0 0.0
  %463 = vmatpush2.msra.mxu0 0.0
  %464 = vmatprep.subr.mxu0 0.0
  %465 = vmatpush2.msra.mxu0 0.0
  %466 = vmatprep.subr.mxu0 0.0
  %467 = vmatpush2.msra.mxu0 0.0
  %468 = vmatprep.subr.mxu0 0.0
  %469 = vmatpush2.msra.mxu0 0.0
  %470 = vmatprep.subr.mxu0 0.0
  %471 = vmatpush2.msra.mxu0 0.0
  %472 = vmatprep.subr.mxu0 0.0
  %473 = vmatpush2.msra.mxu0 0.0
  %474 = vmatprep.subr.mxu0 0.0
  %475 = vmatpush2.msra.mxu0 0.0
  %476 = vmatprep.subr.mxu0 0.0
  %477 = vmatpush2.msra.mxu0 0.0
  %478 = vmatprep.subr.mxu0 0.0
  %479 = vmatpush2.msra.mxu0 0.0
  %480 = vmatprep.subr.mxu0 0.0
  %481 = vmatpush2.msra.mxu0 0.0
  %482 = vmatprep.subr.mxu0 0.0
  %483 = vmatpush2.msra.mxu0 0.0
  %484 = vmatprep.subr.mxu0 0.0
  %485 = vmatpush2.msra.mxu0 0.0
  %486 = vmatprep.subr.mxu0 0.0
  %487 = vmatpush2.msra.mxu0 0.0
  %488 = vmatprep.mubr.f32.mxu0 0.0
  %489 = vmatmul.mubr.f32.gmra.mxu0 %v104
  %v490 = vpop.f32.mrf.mxu0
  %v491 = vadd.f32 0.0, %v490
  %v492 = vpop.f32.mrf.mxu0
  %493 = vdwg.mxu0
  %v494 = vmul.f32 %v420, %v420
  %v495 = vsub.f32 %v491, %v494
  %v496 = vadd.f32 %v495, 1e-05
  %v497 = vrsqrt.pop %v496
  %v498 = vmul.f32 %v273, %v497
  %v499 = vmul.f32 %v420, %v498
  %v500 = vsub.f32 %v274, %v499
  %v501 = vlaneseq
  %v502 = vshrl.u32 %v501, 7
  %v503 = vsub.s32 0, %v502
  %v504 = vrot.slane %v498, %v503
  %v505 = vmul.f32 %v352, %v504
  %v506 = vlaneseq
  %v507 = vshrl.u32 %v506, 7
  %v508 = vsub.s32 0, %v507
  %v509 = vrot.slane %v500, %v508
  %v510 = vadd.f32 %v505, %v509
  %v511 = vld [vmem:[%s1 + $0x90] sm:$0xff]
  %v512 = vld [vmem:[%s1 + $0x98] sm:$0xff]
  %v513 = vld [vmem:[%s1 + $0xa0] sm:$0xff]
  %v514 = vld [vmem:[%s1 + $0xa8] sm:$0xff]
  %v515 = vld [vmem:[%s1 + $0xb0] sm:$0xff]
  %v516 = vld [vmem:[%s1 + $0xb8] sm:$0xff]
  %v517 = vld [vmem:[%s1 + $0xc0] sm:$0xff]
  %v518 = vld [vmem:[%s1 + $0xc8] sm:$0xff]
  %v519 = vld [vmem:[%s1 + $0xd0] sm:$0x1]
  %v520 = vld [vmem:[%s1 + $0xd1] sm:$0x1]
  %v521 = vld [vmem:[%s1 + $0xd2] sm:$0x1]
  %v522 = vlaneseq
  %v523 = vshrl.u32 %v522, 7
  %v524 = vsub.s32 0, %v523
  %v525 = vrot.slane %v519, %v524
  %v527 = vsel %vm27, %v510, 0
  %529 = vmatprep.subr.mxu0 0.0
  %530 = vmatpush1.msra.mxu0 0.0
  %531 = vmatprep.subr.mxu0 0.0
  %532 = vmatpush1.msra.mxu0 0.0
  %533 = vmatprep.subr.mxu0 0.0
  %534 = vmatpush1.msra.mxu0 0.0
  %535 = vmatprep.subr.mxu0 0.0
  %536 = vmatpush1.msra.mxu0 0.0
  %537 = vmatprep.subr.mxu0 0.0
  %538 = vmatpush1.msra.mxu0 0.0
  %539 = vmatprep.subr.mxu0 0.0
  %540 = vmatpush1.msra.mxu0 0.0
  %541 = vmatprep.subr.mxu0 0.0
  %542 = vmatpush1.msra.mxu0 0.0
  %543 = vmatprep.subr.mxu0 0.0
  %544 = vmatpush1.msra.mxu0 0.0
  %545 = vmatprep.subr.mxu0 0.0
  %546 = vmatpush1.msra.mxu0 %v518
  %547 = vmatprep.subr.mxu0 0.0
  %548 = vmatpush1.msra.mxu0 %v517
  %549 = vmatprep.subr.mxu0 0.0
  %550 = vmatpush1.msra.mxu0 %v516
  %551 = vmatprep.subr.mxu0 0.0
  %552 = vmatpush1.msra.mxu0 %v515
  %553 = vmatprep.subr.mxu0 0.0
  %554 = vmatpush1.msra.mxu0 %v514
  %555 = vmatprep.subr.mxu0 0.0
  %556 = vmatpush1.msra.mxu0 %v513
  %557 = vmatprep.subr.mxu0 0.0
  %558 = vmatpush1.msra.mxu0 %v512
  %559 = vmatprep.subr.mxu0 0.0
  %560 = vmatpush1.msra.mxu0 %v511
  %561 = vmatprep.subr.mxu0 0.0
  %562 = vmatpush2.msra.mxu0 0.0
  %563 = vmatprep.subr.mxu0 0.0
  %564 = vmatpush2.msra.mxu0 0.0
  %565 = vmatprep.subr.mxu0 0.0
  %566 = vmatpush2.msra.mxu0 0.0
  %567 = vmatprep.subr.mxu0 0.0
  %568 = vmatpush2.msra.mxu0 0.0
  %569 = vmatprep.subr.mxu0 0.0
  %570 = vmatpush2.msra.mxu0 0.0
  %571 = vmatprep.subr.mxu0 0.0
  %572 = vmatpush2.msra.mxu0 0.0
  %573 = vmatprep.subr.mxu0 0.0
  %574 = vmatpush2.msra.mxu0 0.0
  %575 = vmatprep.subr.mxu0 0.0
  %576 = vmatpush2.msra.mxu0 0.0
  %577 = vmatprep.subr.mxu0 0.0
  %578 = vmatpush2.msra.mxu0 0.0
  %579 = vmatprep.subr.mxu0 0.0
  %580 = vmatpush2.msra.mxu0 0.0
  %581 = vmatprep.subr.mxu0 0.0
  %582 = vmatpush2.msra.mxu0 0.0
  %583 = vmatprep.subr.mxu0 0.0
  %584 = vmatpush2.msra.mxu0 0.0
  %585 = vmatprep.subr.mxu0 0.0
  %586 = vmatpush2.msra.mxu0 0.0
  %587 = vmatprep.subr.mxu0 0.0
  %588 = vmatpush2.msra.mxu0 0.0
  %589 = vmatprep.subr.mxu0 0.0
  %590 = vmatpush2.msra.mxu0 0.0
  %591 = vmatprep.subr.mxu0 0.0
  %592 = vmatpush2.msra.mxu0 0.0
  %593 = vmatprep.mubr.f32.mxu0 0.0
  %594 = vmatmul.mubr.f32.gmra.mxu0 %v527
  %v595 = vpop.f32.mrf.mxu0
  %v596 = vadd.f32 %v525, %v595
  %v597 = vpop.f32.mrf.mxu0
  %598 = vdwg.mxu0
  %v599 = vmax.f32 %v596, 0.0
  %600 = vmatprep.subr.mxu0 0.0
  %601 = vmatpush1.msra.mxu0 0.0
  %602 = vmatprep.subr.mxu0 0.0
  %603 = vmatpush1.msra.mxu0 0.0
  %604 = vmatprep.subr.mxu0 0.0
  %605 = vmatpush1.msra.mxu0 0.0
  %606 = vmatprep.subr.mxu0 0.0
  %607 = vmatpush1.msra.mxu0 0.0
  %608 = vmatprep.subr.mxu0 0.0
  %609 = vmatpush1.msra.mxu0 0.0
  %610 = vmatprep.subr.mxu0 0.0
  %611 = vmatpush1.msra.mxu0 0.0
  %612 = vmatprep.subr.mxu0 0.0
  %613 = vmatpush1.msra.mxu0 0.0
  %614 = vmatprep.subr.mxu0 0.0
  %615 = vmatpush1.msra.mxu0 0.0
  %616 = vmatprep.subr.mxu0 0.0
  %617 = vmatpush1.msra.mxu0 0.0
  %618 = vmatprep.subr.mxu0 0.0
  %619 = vmatpush1.msra.mxu0 0.0
  %620 = vmatprep.subr.mxu0 0.0
  %621 = vmatpush1.msra.mxu0 0.0
  %622 = vmatprep.subr.mxu0 0.0
  %623 = vmatpush1.msra.mxu0 0.0
  %624 = vmatprep.subr.mxu0 0.0
  %625 = vmatpush1.msra.mxu0 0.0
  %626 = vmatprep.subr.mxu0 0.0
  %627 = vmatpush1.msra.mxu0 0.0
  %628 = vmatprep.subr.mxu0 0.0
  %629 = vmatpush1.msra.mxu0 0.0
  %630 = vmatprep.subr.mxu0 0.0
  %631 = vmatpush1.msra.mxu0 %v599
  %632 = vmatprep.subr.mxu0 0.0
  %633 = vmatpush2.msra.mxu0 0.0
  %634 = vmatprep.subr.mxu0 0.0
  %635 = vmatpush2.msra.mxu0 0.0
  %636 = vmatprep.subr.mxu0 0.0
  %637 = vmatpush2.msra.mxu0 0.0
  %638 = vmatprep.subr.mxu0 0.0
  %639 = vmatpush2.msra.mxu0 0.0
  %640 = vmatprep.subr.mxu0 0.0
  %641 = vmatpush2.msra.mxu0 0.0
  %642 = vmatprep.subr.mxu0 0.0
  %643 = vmatpush2.msra.mxu0 0.0
  %644 = vmatprep.subr.mxu0 0.0
  %645 = vmatpush2.msra.mxu0 0.0
  %646 = vmatprep.subr.mxu0 0.0
  %647 = vmatpush2.msra.mxu0 0.0
  %648 = vmatprep.subr.mxu0 0.0
  %649 = vmatpush2.msra.mxu0 0.0
  %650 = vmatprep.subr.mxu0 0.0
  %651 = vmatpush2.msra.mxu0 0.0
  %652 = vmatprep.subr.mxu0 0.0
  %653 = vmatpush2.msra.mxu0 0.0
  %654 = vmatprep.subr.mxu0 0.0
  %655 = vmatpush2.msra.mxu0 0.0
  %656 = vmatprep.subr.mxu0 0.0
  %657 = vmatpush2.msra.mxu0 0.0
  %658 = vmatprep.subr.mxu0 0.0
  %659 = vmatpush2.msra.mxu0 0.0
  %660 = vmatprep.subr.mxu0 0.0
  %661 = vmatpush2.msra.mxu0 0.0
  %662 = vmatprep.subr.mxu0 0.0
  %663 = vmatpush2.msra.mxu0 0.0
  %664 = vmatprep.mubr.f32.mxu0 0.0
  %665 = vmatmul.mubr.f32.gmra.mxu0 %v104
  %v666 = vpop.f32.mrf.mxu0
  %v667 = vadd.f32 0.0, %v666
  %v668 = vpop.f32.mrf.mxu0
  %669 = vdwg.mxu0
  %v670 = vmul.f32 %v599, %v599
  %671 = vmatprep.subr.mxu0 0.0
  %672 = vmatpush1.msra.mxu0 0.0
  %673 = vmatprep.subr.mxu0 0.0
  %674 = vmatpush1.msra.mxu0 0.0
  %675 = vmatprep.subr.mxu0 0.0
  %676 = vmatpush1.msra.mxu0 0.0
  %677 = vmatprep.subr.mxu0 0.0
  %678 = vmatpush1.msra.mxu0 0.0
  %679 = vmatprep.subr.mxu0 0.0
  %680 = vmatpush1.msra.mxu0 0.0
  %681 = vmatprep.subr.mxu0 0.0
  %682 = vmatpush1.msra.mxu0 0.0
  %683 = vmatprep.subr.mxu0 0.0
  %684 = vmatpush1.msra.mxu0 0.0
  %685 = vmatprep.subr.mxu0 0.0
  %686 = vmatpush1.msra.mxu0 0.0
  %687 = vmatprep.subr.mxu0 0.0
  %688 = vmatpush1.msra.mxu0 0.0
  %689 = vmatprep.subr.mxu0 0.0
  %690 = vmatpush1.msra.mxu0 0.0
  %691 = vmatprep.subr.mxu0 0.0
  %692 = vmatpush1.msra.mxu0 0.0
  %693 = vmatprep.subr.mxu0 0.0
  %694 = vmatpush1.msra.mxu0 0.0
  %695 = vmatprep.subr.mxu0 0.0
  %696 = vmatpush1.msra.mxu0 0.0
  %697 = vmatprep.subr.mxu0 0.0
  %698 = vmatpush1.msra.mxu0 0.0
  %699 = vmatprep.subr.mxu0 0.0
  %700 = vmatpush1.msra.mxu0 0.0
  %701 = vmatprep.subr.mxu0 0.0
  %702 = vmatpush1.msra.mxu0 %v670
  %703 = vmatprep.subr.mxu0 0.0
  %704 = vmatpush2.msra.mxu0 0.0
  %705 = vmatprep.subr.mxu0 0.0
  %706 = vmatpush2.msra.mxu0 0.0
  %707 = vmatprep.subr.mxu0 0.0
  %708 = vmatpush2.msra.mxu0 0.0
  %709 = vmatprep.subr.mxu0 0.0
  %710 = vmatpush2.msra.mxu0 0.0
  %711 = vmatprep.subr.mxu0 0.0
  %712 = vmatpush2.msra.mxu0 0.0
  %713 = vmatprep.subr.mxu0 0.0
  %714 = vmatpush2.msra.mxu0 0.0
  %715 = vmatprep.subr.mxu0 0.0
  %716 = vmatpush2.msra.mxu0 0.0
  %717 = vmatprep.subr.mxu0 0.0
  %718 = vmatpush2.msra.mxu0 0.0
  %719 = vmatprep.subr.mxu0 0.0
  %720 = vmatpush2.msra.mxu0 0.0
  %721 = vmatprep.subr.mxu0 0.0
  %722 = vmatpush2.msra.mxu0 0.0
  %723 = vmatprep.subr.mxu0 0.0
  %724 = vmatpush2.msra.mxu0 0.0
  %725 = vmatprep.subr.mxu0 0.0
  %726 = vmatpush2.msra.mxu0 0.0
  %727 = vmatprep.subr.mxu0 0.0
  %728 = vmatpush2.msra.mxu0 0.0
  %729 = vmatprep.subr.mxu0 0.0
  %730 = vmatpush2.msra.mxu0 0.0
  %731 = vmatprep.subr.mxu0 0.0
  %732 = vmatpush2.msra.mxu0 0.0
  %733 = vmatprep.subr.mxu0 0.0
  %734 = vmatpush2.msra.mxu0 0.0
  %735 = vmatprep.mubr.f32.mxu0 0.0
  %736 = vmatmul.mubr.f32.gmra.mxu0 %v104
  %v737 = vpop.f32.mrf.mxu0
  %v738 = vadd.f32 0.0, %v737
  %v739 = vpop.f32.mrf.mxu0
  %740 = vdwg.mxu0
  %v741 = vmul.f32 %v667, %v667
  %v742 = vsub.f32 %v738, %v741
  %v743 = vadd.f32 %v742, 1e-05
  %v744 = vrsqrt.pop %v743
  %v745 = vmul.f32 %v520, %v744
  %v746 = vmul.f32 %v667, %v745
  %v747 = vsub.f32 %v521, %v746
  %v748 = vlaneseq
  %v749 = vshrl.u32 %v748, 7
  %v750 = vsub.s32 0, %v749
  %v751 = vrot.slane %v745, %v750
  %v752 = vmul.f32 %v599, %v751
  %v753 = vlaneseq
  %v754 = vshrl.u32 %v753, 7
  %v755 = vsub.s32 0, %v754
  %v756 = vrot.slane %v747, %v755
  %v757 = vadd.f32 %v752, %v756
  %v758 = vld [vmem:[%s1 + $0xd8] sm:$0xff]
  %v759 = vld [vmem:[%s1 + $0xe0] sm:$0xff]
  %v760 = vld [vmem:[%s1 + $0xe8] sm:$0xff]
  %v761 = vld [vmem:[%s1 + $0xf0] sm:$0xff]
  %v762 = vld [vmem:[%s1 + $0xf8] sm:$0xff]
  %v763 = vld [vmem:[%s1 + $0x100] sm:$0xff]
  %v764 = vld [vmem:[%s1 + $0x108] sm:$0xff]
  %v765 = vld [vmem:[%s1 + $0x110] sm:$0xff]
  %v766 = vld [vmem:[%s1 + $0x118] sm:$0x1]
  %v767 = vld [vmem:[%s1 + $0x119] sm:$0x1]
  %v768 = vld [vmem:[%s1 + $0x11a] sm:$0x1]
  %v769 = vlaneseq
  %v770 = vshrl.u32 %v769, 7
  %v771 = vsub.s32 0, %v770
  %v772 = vrot.slane %v766, %v771
  %v774 = vsel %vm27, %v757, 0
  %776 = vmatprep.subr.mxu0 0.0
  %777 = vmatpush1.msra.mxu0 0.0
  %778 = vmatprep.subr.mxu0 0.0
  %779 = vmatpush1.msra.mxu0 0.0
  %780 = vmatprep.subr.mxu0 0.0
  %781 = vmatpush1.msra.mxu0 0.0
  %782 = vmatprep.subr.mxu0 0.0
  %783 = vmatpush1.msra.mxu0 0.0
  %784 = vmatprep.subr.mxu0 0.0
  %785 = vmatpush1.msra.mxu0 0.0
  %786 = vmatprep.subr.mxu0 0.0
  %787 = vmatpush1.msra.mxu0 0.0
  %788 = vmatprep.subr.mxu0 0.0
  %789 = vmatpush1.msra.mxu0 0.0
  %790 = vmatprep.subr.mxu0 0.0
  %791 = vmatpush1.msra.mxu0 0.0
  %792 = vmatprep.subr.mxu0 0.0
  %793 = vmatpush1.msra.mxu0 %v765
  %794 = vmatprep.subr.mxu0 0.0
  %795 = vmatpush1.msra.mxu0 %v764
  %796 = vmatprep.subr.mxu0 0.0
  %797 = vmatpush1.msra.mxu0 %v763
  %798 = vmatprep.subr.mxu0 0.0
  %799 = vmatpush1.msra.mxu0 %v762
  %800 = vmatprep.subr.mxu0 0.0
  %801 = vmatpush1.msra.mxu0 %v761
  %802 = vmatprep.subr.mxu0 0.0
  %803 = vmatpush1.msra.mxu0 %v760
  %804 = vmatprep.subr.mxu0 0.0
  %805 = vmatpush1.msra.mxu0 %v759
  %806 = vmatprep.subr.mxu0 0.0
  %807 = vmatpush1.msra.mxu0 %v758
  %808 = vmatprep.subr.mxu0 0.0
  %809 = vmatpush2.msra.mxu0 0.0
  %810 = vmatprep.subr.mxu0 0.0
  %811 = vmatpush2.msra.mxu0 0.0
  %812 = vmatprep.subr.mxu0 0.0
  %813 = vmatpush2.msra.mxu0 0.0
  %814 = vmatprep.subr.mxu0 0.0
  %815 = vmatpush2.msra.mxu0 0.0
  %816 = vmatprep.subr.mxu0 0.0
  %817 = vmatpush2.msra.mxu0 0.0
  %818 = vmatprep.subr.mxu0 0.0
  %819 = vmatpush2.msra.mxu0 0.0
  %820 = vmatprep.subr.mxu0 0.0
  %821 = vmatpush2.msra.mxu0 0.0
  %822 = vmatprep.subr.mxu0 0.0
  %823 = vmatpush2.msra.mxu0 0.0
  %824 = vmatprep.subr.mxu0 0.0
  %825 = vmatpush2.msra.mxu0 0.0
  %826 = vmatprep.subr.mxu0 0.0
  %827 = vmatpush2.msra.mxu0 0.0
  %828 = vmatprep.subr.mxu0 0.0
  %829 = vmatpush2.msra.mxu0 0.0
  %830 = vmatprep.subr.mxu0 0.0
  %831 = vmatpush2.msra.mxu0 0.0
  %832 = vmatprep.subr.mxu0 0.0
  %833 = vmatpush2.msra.mxu0 0.0
  %834 = vmatprep.subr.mxu0 0.0
  %835 = vmatpush2.msra.mxu0 0.0
  %836 = vmatprep.subr.mxu0 0.0
  %837 = vmatpush2.msra.mxu0 0.0
  %838 = vmatprep.subr.mxu0 0.0
  %839 = vmatpush2.msra.mxu0 0.0
  %840 = vmatprep.mubr.f32.mxu0 0.0
  %841 = vmatmul.mubr.f32.gmra.mxu0 %v774
  %v842 = vpop.f32.mrf.mxu0
  %v843 = vadd.f32 %v772, %v842
  %v844 = vpop.f32.mrf.mxu0
  %845 = vdwg.mxu0
  %v846 = vmax.f32 %v843, 0.0
  %847 = vmatprep.subr.mxu0 0.0
  %848 = vmatpush1.msra.mxu0 0.0
  %849 = vmatprep.subr.mxu0 0.0
  %850 = vmatpush1.msra.mxu0 0.0
  %851 = vmatprep.subr.mxu0 0.0
  %852 = vmatpush1.msra.mxu0 0.0
  %853 = vmatprep.subr.mxu0 0.0
  %854 = vmatpush1.msra.mxu0 0.0
  %855 = vmatprep.subr.mxu0 0.0
  %856 = vmatpush1.msra.mxu0 0.0
  %857 = vmatprep.subr.mxu0 0.0
  %858 = vmatpush1.msra.mxu0 0.0
  %859 = vmatprep.subr.mxu0 0.0
  %860 = vmatpush1.msra.mxu0 0.0
  %861 = vmatprep.subr.mxu0 0.0
  %862 = vmatpush1.msra.mxu0 0.0
  %863 = vmatprep.subr.mxu0 0.0
  %864 = vmatpush1.msra.mxu0 0.0
  %865 = vmatprep.subr.mxu0 0.0
  %866 = vmatpush1.msra.mxu0 0.0
  %867 = vmatprep.subr.mxu0 0.0
  %868 = vmatpush1.msra.mxu0 0.0
  %869 = vmatprep.subr.mxu0 0.0
  %870 = vmatpush1.msra.mxu0 0.0
  %871 = vmatprep.subr.mxu0 0.0
  %872 = vmatpush1.msra.mxu0 0.0
  %873 = vmatprep.subr.mxu0 0.0
  %874 = vmatpush1.msra.mxu0 0.0
  %875 = vmatprep.subr.mxu0 0.0
  %876 = vmatpush1.msra.mxu0 0.0
  %877 = vmatprep.subr.mxu0 0.0
  %878 = vmatpush1.msra.mxu0 %v846
  %879 = vmatprep.subr.mxu0 0.0
  %880 = vmatpush2.msra.mxu0 0.0
  %881 = vmatprep.subr.mxu0 0.0
  %882 = vmatpush2.msra.mxu0 0.0
  %883 = vmatprep.subr.mxu0 0.0
  %884 = vmatpush2.msra.mxu0 0.0
  %885 = vmatprep.subr.mxu0 0.0
  %886 = vmatpush2.msra.mxu0 0.0
  %887 = vmatprep.subr.mxu0 0.0
  %888 = vmatpush2.msra.mxu0 0.0
  %889 = vmatprep.subr.mxu0 0.0
  %890 = vmatpush2.msra.mxu0 0.0
  %891 = vmatprep.subr.mxu0 0.0
  %892 = vmatpush2.msra.mxu0 0.0
  %893 = vmatprep.subr.mxu0 0.0
  %894 = vmatpush2.msra.mxu0 0.0
  %895 = vmatprep.subr.mxu0 0.0
  %896 = vmatpush2.msra.mxu0 0.0
  %897 = vmatprep.subr.mxu0 0.0
  %898 = vmatpush2.msra.mxu0 0.0
  %899 = vmatprep.subr.mxu0 0.0
  %900 = vmatpush2.msra.mxu0 0.0
  %901 = vmatprep.subr.mxu0 0.0
  %902 = vmatpush2.msra.mxu0 0.0
  %903 = vmatprep.subr.mxu0 0.0
  %904 = vmatpush2.msra.mxu0 0.0
  %905 = vmatprep.subr.mxu0 0.0
  %906 = vmatpush2.msra.mxu0 0.0
  %907 = vmatprep.subr.mxu0 0.0
  %908 = vmatpush2.msra.mxu0 0.0
  %909 = vmatprep.subr.mxu0 0.0
  %910 = vmatpush2.msra.mxu0 0.0
  %911 = vmatprep.mubr.f32.mxu0 0.0
  %912 = vmatmul.mubr.f32.gmra.mxu0 %v104
  %v913 = vpop.f32.mrf.mxu0
  %v914 = vadd.f32 0.0, %v913
  %v915 = vpop.f32.mrf.mxu0
  %916 = vdwg.mxu0
  %v917 = vmul.f32 %v846, %v846
  %918 = vmatprep.subr.mxu0 0.0
  %919 = vmatpush1.msra.mxu0 0.0
  %920 = vmatprep.subr.mxu0 0.0
  %921 = vmatpush1.msra.mxu0 0.0
  %922 = vmatprep.subr.mxu0 0.0
  %923 = vmatpush1.msra.mxu0 0.0
  %924 = vmatprep.subr.mxu0 0.0
  %925 = vmatpush1.msra.mxu0 0.0
  %926 = vmatprep.subr.mxu0 0.0
  %927 = vmatpush1.msra.mxu0 0.0
  %928 = vmatprep.subr.mxu0 0.0
  %929 = vmatpush1.msra.mxu0 0.0
  %930 = vmatprep.subr.mxu0 0.0
  %931 = vmatpush1.msra.mxu0 0.0
  %932 = vmatprep.subr.mxu0 0.0
  %933 = vmatpush1.msra.mxu0 0.0
  %934 = vmatprep.subr.mxu0 0.0
  %935 = vmatpush1.msra.mxu0 0.0
  %936 = vmatprep.subr.mxu0 0.0
  %937 = vmatpush1.msra.mxu0 0.0
  %938 = vmatprep.subr.mxu0 0.0
  %939 = vmatpush1.msra.mxu0 0.0
  %940 = vmatprep.subr.mxu0 0.0
  %941 = vmatpush1.msra.mxu0 0.0
  %942 = vmatprep.subr.mxu0 0.0
  %943 = vmatpush1.msra.mxu0 0.0
  %944 = vmatprep.subr.mxu0 0.0
  %945 = vmatpush1.msra.mxu0 0.0
  %946 = vmatprep.subr.mxu0 0.0
  %947 = vmatpush1.msra.mxu0 0.0
  %948 = vmatprep.subr.mxu0 0.0
  %949 = vmatpush1.msra.mxu0 %v917
  %950 = vmatprep.subr.mxu0 0.0
  %951 = vmatpush2.msra.mxu0 0.0
  %952 = vmatprep.subr.mxu0 0.0
  %953 = vmatpush2.msra.mxu0 0.0
  %954 = vmatprep.subr.mxu0 0.0
  %955 = vmatpush2.msra.mxu0 0.0
  %956 = vmatprep.subr.mxu0 0.0
  %957 = vmatpush2.msra.mxu0 0.0
  %958 = vmatprep.subr.mxu0 0.0
  %959 = vmatpush2.msra.mxu0 0.0
  %960 = vmatprep.subr.mxu0 0.0
  %961 = vmatpush2.msra.mxu0 0.0
  %962 = vmatprep.subr.mxu0 0.0
  %963 = vmatpush2.msra.mxu0 0.0
  %964 = vmatprep.subr.mxu0 0.0
  %965 = vmatpush2.msra.mxu0 0.0
  %966 = vmatprep.subr.mxu0 0.0
  %967 = vmatpush2.msra.mxu0 0.0
  %968 = vmatprep.subr.mxu0 0.0
  %969 = vmatpush2.msra.mxu0 0.0
  %970 = vmatprep.subr.mxu0 0.0
  %971 = vmatpush2.msra.mxu0 0.0
  %972 = vmatprep.subr.mxu0 0.0
  %973 = vmatpush2.msra.mxu0 0.0
  %974 = vmatprep.subr.mxu0 0.0
  %975 = vmatpush2.msra.mxu0 0.0
  %976 = vmatprep.subr.mxu0 0.0
  %977 = vmatpush2.msra.mxu0 0.0
  %978 = vmatprep.subr.mxu0 0.0
  %979 = vmatpush2.msra.mxu0 0.0
  %980 = vmatprep.subr.mxu0 0.0
  %981 = vmatpush2.msra.mxu0 0.0
  %982 = vmatprep.mubr.f32.mxu0 0.0
  %983 = vmatmul.mubr.f32.gmra.mxu0 %v104
  %v984 = vpop.f32.mrf.mxu0
  %v985 = vadd.f32 0.0, %v984
  %v986 = vpop.f32.mrf.mxu0
  %987 = vdwg.mxu0
  %v988 = vmul.f32 %v914, %v914
  %v989 = vsub.f32 %v985, %v988
  %v990 = vadd.f32 %v989, 1e-05
  %v991 = vrsqrt.pop %v990
  %v992 = vmul.f32 %v767, %v991
  %v993 = vmul.f32 %v914, %v992
  %v994 = vsub.f32 %v768, %v993
  %v995 = vlaneseq
  %v996 = vshrl.u32 %v995, 7
  %v997 = vsub.s32 0, %v996
  %v998 = vrot.slane %v992, %v997
  %v999 = vmul.f32 %v846, %v998
  %v1000 = vlaneseq
  %v1001 = vshrl.u32 %v1000, 7
  %v1002 = vsub.s32 0, %v1001
  %v1003 = vrot.slane %v994, %v1002
  %v1004 = vadd.f32 %v999, %v1003
  %v1005 = vld [vmem:[%s1 + $0x120] sm:$0xff]
  %v1006 = vld [vmem:[%s1 + $0x128] sm:$0xff]
  %v1007 = vld [vmem:[%s1 + $0x130] sm:$0xff]
  %v1008 = vld [vmem:[%s1 + $0x138] sm:$0xff]
  %v1009 = vld [vmem:[%s1 + $0x140] sm:$0xff]
  %v1010 = vld [vmem:[%s1 + $0x148] sm:$0xff]
  %v1011 = vld [vmem:[%s1 + $0x150] sm:$0xff]
  %v1012 = vld [vmem:[%s1 + $0x158] sm:$0xff]
  %v1013 = vld [vmem:[%s1 + $0x160] sm:$0x1]
  %v1014 = vld [vmem:[%s1 + $0x161] sm:$0x1]
  %v1015 = vld [vmem:[%s1 + $0x162] sm:$0x1]
  %v1016 = vlaneseq
  %v1017 = vshrl.u32 %v1016, 7
  %v1018 = vsub.s32 0, %v1017
  %v1019 = vrot.slane %v1013, %v1018
  %v1021 = vsel %vm27, %v1004, 0
  %1023 = vmatprep.subr.mxu0 0.0
  %1024 = vmatpush1.msra.mxu0 0.0
  %1025 = vmatprep.subr.mxu0 0.0
  %1026 = vmatpush1.msra.mxu0 0.0
  %1027 = vmatprep.subr.mxu0 0.0
  %1028 = vmatpush1.msra.mxu0 0.0
  %1029 = vmatprep.subr.mxu0 0.0
  %1030 = vmatpush1.msra.mxu0 0.0
  %1031 = vmatprep.subr.mxu0 0.0
  %1032 = vmatpush1.msra.mxu0 0.0
  %1033 = vmatprep.subr.mxu0 0.0
  %1034 = vmatpush1.msra.mxu0 0.0
  %1035 = vmatprep.subr.mxu0 0.0
  %1036 = vmatpush1.msra.mxu0 0.0
  %1037 = vmatprep.subr.mxu0 0.0
  %1038 = vmatpush1.msra.mxu0 0.0
  %1039 = vmatprep.subr.mxu0 0.0
  %1040 = vmatpush1.msra.mxu0 %v1012
  %1041 = vmatprep.subr.mxu0 0.0
  %1042 = vmatpush1.msra.mxu0 %v1011
  %1043 = vmatprep.subr.mxu0 0.0
  %1044 = vmatpush1.msra.mxu0 %v1010
  %1045 = vmatprep.subr.mxu0 0.0
  %1046 = vmatpush1.msra.mxu0 %v1009
  %1047 = vmatprep.subr.mxu0 0.0
  %1048 = vmatpush1.msra.mxu0 %v1008
  %1049 = vmatprep.subr.mxu0 0.0
  %1050 = vmatpush1.msra.mxu0 %v1007
  %1051 = vmatprep.subr.mxu0 0.0
  %1052 = vmatpush1.msra.mxu0 %v1006
  %1053 = vmatprep.subr.mxu0 0.0
  %1054 = vmatpush1.msra.mxu0 %v1005
  %1055 = vmatprep.subr.mxu0 0.0
  %1056 = vmatpush2.msra.mxu0 0.0
  %1057 = vmatprep.subr.mxu0 0.0
  %1058 = vmatpush2.msra.mxu0 0.0
  %1059 = vmatprep.subr.mxu0 0.0
  %1060 = vmatpush2.msra.mxu0 0.0
  %1061 = vmatprep.subr.mxu0 0.0
  %1062 = vmatpush2.msra.mxu0 0.0
  %1063 = vmatprep.subr.mxu0 0.0
  %1064 = vmatpush2.msra.mxu0 0.0
  %1065 = vmatprep.subr.mxu0 0.0
  %1066 = vmatpush2.msra.mxu0 0.0
  %1067 = vmatprep.subr.mxu0 0.0
  %1068 = vmatpush2.msra.mxu0 0.0
  %1069 = vmatprep.subr.mxu0 0.0
  %1070 = vmatpush2.msra.mxu0 0.0
  %1071 = vmatprep.subr.mxu0 0.0
  %1072 = vmatpush2.msra.mxu0 0.0
  %1073 = vmatprep.subr.mxu0 0.0
  %1074 = vmatpush2.msra.mxu0 0.0
  %1075 = vmatprep.subr.mxu0 0.0
  %1076 = vmatpush2.msra.mxu0 0.0
  %1077 = vmatprep.subr.mxu0 0.0
  %1078 = vmatpush2.msra.mxu0 0.0
  %1079 = vmatprep.subr.mxu0 0.0
  %1080 = vmatpush2.msra.mxu0 0.0
  %1081 = vmatprep.subr.mxu0 0.0
  %1082 = vmatpush2.msra.mxu0 0.0
  %1083 = vmatprep.subr.mxu0 0.0
  %1084 = vmatpush2.msra.mxu0 0.0
  %1085 = vmatprep.subr.mxu0 0.0
  %1086 = vmatpush2.msra.mxu0 0.0
  %1087 = vmatprep.mubr.f32.mxu0 0.0
  %1088 = vmatmul.mubr.f32.gmra.mxu0 %v1021
  %v1089 = vpop.f32.mrf.mxu0
  %v1090 = vadd.f32 %v1019, %v1089
  %v1091 = vpop.f32.mrf.mxu0
  %1092 = vdwg.mxu0
  %v1093 = vmax.f32 %v1090, 0.0
  %1094 = vmatprep.subr.mxu0 0.0
  %1095 = vmatpush1.msra.mxu0 0.0
  %1096 = vmatprep.subr.mxu0 0.0
  %1097 = vmatpush1.msra.mxu0 0.0
  %1098 = vmatprep.subr.mxu0 0.0
  %1099 = vmatpush1.msra.mxu0 0.0
  %1100 = vmatprep.subr.mxu0 0.0
  %1101 = vmatpush1.msra.mxu0 0.0
  %1102 = vmatprep.subr.mxu0 0.0
  %1103 = vmatpush1.msra.mxu0 0.0
  %1104 = vmatprep.subr.mxu0 0.0
  %1105 = vmatpush1.msra.mxu0 0.0
  %1106 = vmatprep.subr.mxu0 0.0
  %1107 = vmatpush1.msra.mxu0 0.0
  %1108 = vmatprep.subr.mxu0 0.0
  %1109 = vmatpush1.msra.mxu0 0.0
  %1110 = vmatprep.subr.mxu0 0.0
  %1111 = vmatpush1.msra.mxu0 0.0
  %1112 = vmatprep.subr.mxu0 0.0
  %1113 = vmatpush1.msra.mxu0 0.0
  %1114 = vmatprep.subr.mxu0 0.0
  %1115 = vmatpush1.msra.mxu0 0.0
  %1116 = vmatprep.subr.mxu0 0.0
  %1117 = vmatpush1.msra.mxu0 0.0
  %1118 = vmatprep.subr.mxu0 0.0
  %1119 = vmatpush1.msra.mxu0 0.0
  %1120 = vmatprep.subr.mxu0 0.0
  %1121 = vmatpush1.msra.mxu0 0.0
  %1122 = vmatprep.subr.mxu0 0.0
  %1123 = vmatpush1.msra.mxu0 0.0
  %1124 = vmatprep.subr.mxu0 0.0
  %1125 = vmatpush1.msra.mxu0 %v1093
  %1126 = vmatprep.subr.mxu0 0.0
  %1127 = vmatpush2.msra.mxu0 0.0
  %1128 = vmatprep.subr.mxu0 0.0
  %1129 = vmatpush2.msra.mxu0 0.0
  %1130 = vmatprep.subr.mxu0 0.0
  %1131 = vmatpush2.msra.mxu0 0.0
  %1132 = vmatprep.subr.mxu0 0.0
  %1133 = vmatpush2.msra.mxu0 0.0
  %1134 = vmatprep.subr.mxu0 0.0
  %1135 = vmatpush2.msra.mxu0 0.0
  %1136 = vmatprep.subr.mxu0 0.0
  %1137 = vmatpush2.msra.mxu0 0.0
  %1138 = vmatprep.subr.mxu0 0.0
  %1139 = vmatpush2.msra.mxu0 0.0
  %1140 = vmatprep.subr.mxu0 0.0
  %1141 = vmatpush2.msra.mxu0 0.0
  %1142 = vmatprep.subr.mxu0 0.0
  %1143 = vmatpush2.msra.mxu0 0.0
  %1144 = vmatprep.subr.mxu0 0.0
  %1145 = vmatpush2.msra.mxu0 0.0
  %1146 = vmatprep.subr.mxu0 0.0
  %1147 = vmatpush2.msra.mxu0 0.0
  %1148 = vmatprep.subr.mxu0 0.0
  %1149 = vmatpush2.msra.mxu0 0.0
  %1150 = vmatprep.subr.mxu0 0.0
  %1151 = vmatpush2.msra.mxu0 0.0
  %1152 = vmatprep.subr.mxu0 0.0
  %1153 = vmatpush2.msra.mxu0 0.0
  %1154 = vmatprep.subr.mxu0 0.0
  %1155 = vmatpush2.msra.mxu0 0.0
  %1156 = vmatprep.subr.mxu0 0.0
  %1157 = vmatpush2.msra.mxu0 0.0
  %1158 = vmatprep.mubr.f32.mxu0 0.0
  %1159 = vmatmul.mubr.f32.gmra.mxu0 %v104
  %v1160 = vpop.f32.mrf.mxu0
  %v1161 = vadd.f32 0.0, %v1160
  %v1162 = vpop.f32.mrf.mxu0
  %1163 = vdwg.mxu0
  %v1164 = vmul.f32 %v1093, %v1093
  %1165 = vmatprep.subr.mxu0 0.0
  %1166 = vmatpush1.msra.mxu0 0.0
  %1167 = vmatprep.subr.mxu0 0.0
  %1168 = vmatpush1.msra.mxu0 0.0
  %1169 = vmatprep.subr.mxu0 0.0
  %1170 = vmatpush1.msra.mxu0 0.0
  %1171 = vmatprep.subr.mxu0 0.0
  %1172 = vmatpush1.msra.mxu0 0.0
  %1173 = vmatprep.subr.mxu0 0.0
  %1174 = vmatpush1.msra.mxu0 0.0
  %1175 = vmatprep.subr.mxu0 0.0
  %1176 = vmatpush1.msra.mxu0 0.0
  %1177 = vmatprep.subr.mxu0 0.0
  %1178 = vmatpush1.msra.mxu0 0.0
  %1179 = vmatprep.subr.mxu0 0.0
  %1180 = vmatpush1.msra.mxu0 0.0
  %1181 = vmatprep.subr.mxu0 0.0
  %1182 = vmatpush1.msra.mxu0 0.0
  %1183 = vmatprep.subr.mxu0 0.0
  %1184 = vmatpush1.msra.mxu0 0.0
  %1185 = vmatprep.subr.mxu0 0.0
  %1186 = vmatpush1.msra.mxu0 0.0
  %1187 = vmatprep.subr.mxu0 0.0
  %1188 = vmatpush1.msra.mxu0 0.0
  %1189 = vmatprep.subr.mxu0 0.0
  %1190 = vmatpush1.msra.mxu0 0.0
  %1191 = vmatprep.subr.mxu0 0.0
  %1192 = vmatpush1.msra.mxu0 0.0
  %1193 = vmatprep.subr.mxu0 0.0
  %1194 = vmatpush1.msra.mxu0 0.0
  %1195 = vmatprep.subr.mxu0 0.0
  %1196 = vmatpush1.msra.mxu0 %v1164
  %1197 = vmatprep.subr.mxu0 0.0
  %1198 = vmatpush2.msra.mxu0 0.0
  %1199 = vmatprep.subr.mxu0 0.0
  %1200 = vmatpush2.msra.mxu0 0.0
  %1201 = vmatprep.subr.mxu0 0.0
  %1202 = vmatpush2.msra.mxu0 0.0
  %1203 = vmatprep.subr.mxu0 0.0
  %1204 = vmatpush2.msra.mxu0 0.0
  %1205 = vmatprep.subr.mxu0 0.0
  %1206 = vmatpush2.msra.mxu0 0.0
  %1207 = vmatprep.subr.mxu0 0.0
  %1208 = vmatpush2.msra.mxu0 0.0
  %1209 = vmatprep.subr.mxu0 0.0
  %1210 = vmatpush2.msra.mxu0 0.0
  %1211 = vmatprep.subr.mxu0 0.0
  %1212 = vmatpush2.msra.mxu0 0.0
  %1213 = vmatprep.subr.mxu0 0.0
  %1214 = vmatpush2.msra.mxu0 0.0
  %1215 = vmatprep.subr.mxu0 0.0
  %1216 = vmatpush2.msra.mxu0 0.0
  %1217 = vmatprep.subr.mxu0 0.0
  %1218 = vmatpush2.msra.mxu0 0.0
  %1219 = vmatprep.subr.mxu0 0.0
  %1220 = vmatpush2.msra.mxu0 0.0
  %1221 = vmatprep.subr.mxu0 0.0
  %1222 = vmatpush2.msra.mxu0 0.0
  %1223 = vmatprep.subr.mxu0 0.0
  %1224 = vmatpush2.msra.mxu0 0.0
  %1225 = vmatprep.subr.mxu0 0.0
  %1226 = vmatpush2.msra.mxu0 0.0
  %1227 = vmatprep.subr.mxu0 0.0
  %1228 = vmatpush2.msra.mxu0 0.0
  %1229 = vmatprep.mubr.f32.mxu0 0.0
  %1230 = vmatmul.mubr.f32.gmra.mxu0 %v104
  %v1231 = vpop.f32.mrf.mxu0
  %v1232 = vadd.f32 0.0, %v1231
  %v1233 = vpop.f32.mrf.mxu0
  %1234 = vdwg.mxu0
  %v1235 = vmul.f32 %v1161, %v1161
  %v1236 = vsub.f32 %v1232, %v1235
  %v1237 = vadd.f32 %v1236, 1e-05
  %v1238 = vrsqrt.pop %v1237
  %v1239 = vmul.f32 %v1014, %v1238
  %v1240 = vmul.f32 %v1161, %v1239
  %v1241 = vsub.f32 %v1015, %v1240
  %v1242 = vlaneseq
  %v1243 = vshrl.u32 %v1242, 7
  %v1244 = vsub.s32 0, %v1243
  %v1245 = vrot.slane %v1239, %v1244
  %v1246 = vmul.f32 %v1093, %v1245
  %v1247 = vlaneseq
  %v1248 = vshrl.u32 %v1247, 7
  %v1249 = vsub.s32 0, %v1248
  %v1250 = vrot.slane %v1241, %v1249
  %v1251 = vadd.f32 %v1246, %v1250
  %v1252 = vld [vmem:[%s1 + $0x168] sm:$0xff]
  %v1253 = vld [vmem:[%s1 + $0x170] sm:$0xff]
  %v1254 = vld [vmem:[%s1 + $0x178] sm:$0xff]
  %v1255 = vld [vmem:[%s1 + $0x180] sm:$0xff]
  %v1256 = vld [vmem:[%s1 + $0x188] sm:$0xff]
  %v1257 = vld [vmem:[%s1 + $0x190] sm:$0xff]
  %v1258 = vld [vmem:[%s1 + $0x198] sm:$0xff]
  %v1259 = vld [vmem:[%s1 + $0x1a0] sm:$0xff]
  %v1260 = vld [vmem:[%s1 + $0x1a8] sm:$0x1]
  %v1261 = vlaneseq
  %v1262 = vshrl.u32 %v1261, 7
  %v1263 = vsub.s32 0, %v1262
  %v1264 = vrot.slane %v1260, %v1263
  %v1266 = vsel %vm27, %v1251, 0
  %1268 = vmatprep.subr.mxu0 0.0
  %1269 = vmatpush1.msra.mxu0 0.0
  %1270 = vmatprep.subr.mxu0 0.0
  %1271 = vmatpush1.msra.mxu0 0.0
  %1272 = vmatprep.subr.mxu0 0.0
  %1273 = vmatpush1.msra.mxu0 0.0
  %1274 = vmatprep.subr.mxu0 0.0
  %1275 = vmatpush1.msra.mxu0 0.0
  %1276 = vmatprep.subr.mxu0 0.0
  %1277 = vmatpush1.msra.mxu0 0.0
  %1278 = vmatprep.subr.mxu0 0.0
  %1279 = vmatpush1.msra.mxu0 0.0
  %1280 = vmatprep.subr.mxu0 0.0
  %1281 = vmatpush1.msra.mxu0 0.0
  %1282 = vmatprep.subr.mxu0 0.0
  %1283 = vmatpush1.msra.mxu0 0.0
  %1284 = vmatprep.subr.mxu0 0.0
  %1285 = vmatpush1.msra.mxu0 %v1259
  %1286 = vmatprep.subr.mxu0 0.0
  %1287 = vmatpush1.msra.mxu0 %v1258
  %1288 = vmatprep.subr.mxu0 0.0
  %1289 = vmatpush1.msra.mxu0 %v1257
  %1290 = vmatprep.subr.mxu0 0.0
  %1291 = vmatpush1.msra.mxu0 %v1256
  %1292 = vmatprep.subr.mxu0 0.0
  %1293 = vmatpush1.msra.mxu0 %v1255
  %1294 = vmatprep.subr.mxu0 0.0
  %1295 = vmatpush1.msra.mxu0 %v1254
  %1296 = vmatprep.subr.mxu0 0.0
  %1297 = vmatpush1.msra.mxu0 %v1253
  %1298 = vmatprep.subr.mxu0 0.0
  %1299 = vmatpush1.msra.mxu0 %v1252
  %1300 = vmatprep.subr.mxu0 0.0
  %1301 = vmatpush2.msra.mxu0 0.0
  %1302 = vmatprep.subr.mxu0 0.0
  %1303 = vmatpush2.msra.mxu0 0.0
  %1304 = vmatprep.subr.mxu0 0.0
  %1305 = vmatpush2.msra.mxu0 0.0
  %1306 = vmatprep.subr.mxu0 0.0
  %1307 = vmatpush2.msra.mxu0 0.0
  %1308 = vmatprep.subr.mxu0 0.0
  %1309 = vmatpush2.msra.mxu0 0.0
  %1310 = vmatprep.subr.mxu0 0.0
  %1311 = vmatpush2.msra.mxu0 0.0
  %1312 = vmatprep.subr.mxu0 0.0
  %1313 = vmatpush2.msra.mxu0 0.0
  %1314 = vmatprep.subr.mxu0 0.0
  %1315 = vmatpush2.msra.mxu0 0.0
  %1316 = vmatprep.subr.mxu0 0.0
  %1317 = vmatpush2.msra.mxu0 0.0
  %1318 = vmatprep.subr.mxu0 0.0
  %1319 = vmatpush2.msra.mxu0 0.0
  %1320 = vmatprep.subr.mxu0 0.0
  %1321 = vmatpush2.msra.mxu0 0.0
  %1322 = vmatprep.subr.mxu0 0.0
  %1323 = vmatpush2.msra.mxu0 0.0
  %1324 = vmatprep.subr.mxu0 0.0
  %1325 = vmatpush2.msra.mxu0 0.0
  %1326 = vmatprep.subr.mxu0 0.0
  %1327 = vmatpush2.msra.mxu0 0.0
  %1328 = vmatprep.subr.mxu0 0.0
  %1329 = vmatpush2.msra.mxu0 0.0
  %1330 = vmatprep.subr.mxu0 0.0
  %1331 = vmatpush2.msra.mxu0 0.0
  %1332 = vmatprep.mubr.f32.mxu0 0.0
  %1333 = vmatmul.mubr.f32.gmra.mxu0 %v1266
  %v1334 = vpop.f32.mrf.mxu0
  %v1335 = vadd.f32 %v1264, %v1334
  %v1336 = vpop.f32.mrf.mxu0
  %1337 = vdwg.mxu0
  %1338 = vst.msk [vmem:[%s2] sm:$0xff] %vm27, %v1335
  // Predicated region
  $region10: #{my_model_2yaw_forward.1} parent=0 // pred_check
    _
  $region11: #{my_model_2yaw_forward.1} parent=0 // pred_check_branch
    %1340 = sbr.rel (0) target = $region13
  $region12: #{my_model_2yaw_forward.1} parent=0 // pred_region
    _
  $region13: #{my_model_2yaw_forward.1} parent=0 // pred_fallthru
    _
  // Predicated region
  $region14: #{my_model_2yaw_forward.1} parent=0 // pred_check
    _
  $region15: #{my_model_2yaw_forward.1} parent=0 // pred_check_branch
    %1342 = sbr.rel (0) target = $region17
  $region16: #{my_model_2yaw_forward.1} parent=0 // pred_region
    _
  $region17: #{my_model_2yaw_forward.1} parent=0 // pred_fallthru
    _

</llo_original>
